<compile_context>
chip_gen: v7x
topology: tpu7x:2x2x1
jax: 0.10.0
libtpu: 0.0.40
codegen_flags: <defaults>
</compile_context>

<pallas_src>
import functools

import jax
import jax.numpy as jnp
from jax import lax
from jax.experimental import pallas as pl
from jax.experimental.pallas import tpu as pltpu


def _full_spec(shape):
    # full-array VMEM block (no grid) — demo graphs fit VMEM whole.
    return pl.BlockSpec(shape, lambda: (0,) * len(shape))


# ----------------------------------------------------------------------------------
# Fully fused forward kernel:
#   prologue: build softmax masks / has-in-edge masks, hoist loop-invariant matmuls
#   per round: hj = mlp(h); fw/bw attention aggregation; GRU update
#   epilogue: value_network (Linear(H+2,128) -> ReLU -> Linear(128, out_dim))
# ----------------------------------------------------------------------------------
def _fused_forward_kernel(
    x_ref, adj_ref, h0_ref,
    aggr_w_ref, aggr_b_ref,
    wi_fw_ref, wj_fw_ref, b_fw_ref,
    wi_bw_ref, wj_bw_ref, b_bw_ref,
    gru_wfw_ref, gru_wbw_ref, gru_wx_ref, gru_whh_ref,
    gru_bih_ref, gru_bhh_ref,
    vn_w1_ref, vn_b1_ref, vn_w2_ref, vn_b2_ref,
    out_ref,
    *, num_rounds,
):
    N = x_ref.shape[0]
    H = h0_ref.shape[1]
    NEG = jnp.float32(-1e30)

    # ---- loop-invariant prologue (computed once, reused every round) ----
    x = x_ref[...]                                    # (N, Dx)
    adj = adj_ref[...]                                # (N, N); adj[i, j] = 1.0  <=>  edge j -> i
    adj_t = adj.T                                     # backward direction = transposed connectivity
    # TODO(synk): for large graphs, tile the (N,N) masked softmax over destination-row
    # tiles (grid + BlockSpec, online softmax) or go block-sparse with
    # PrefetchScalarGridSpec; this fused single-block kernel assumes the dense mask fits VMEM.

    bias_fw = jnp.where(adj > 0.5, 0.0, NEG)          # additive softmax mask (0 / -1e30)
    bias_bw = jnp.where(adj_t > 0.5, 0.0, NEG)
    has_in_fw = (jnp.sum(adj, axis=1, keepdims=True) > 0.5).astype(jnp.float32)    # (N, 1)
    has_in_bw = (jnp.sum(adj_t, axis=1, keepdims=True) > 0.5).astype(jnp.float32)  # (N, 1)

    wi_fw, wj_fw, b_fw = wi_fw_ref[...], wj_fw_ref[...], b_fw_ref[...]   # (1,H),(1,H),(1,1)
    wi_bw, wj_bw, b_bw = wi_bw_ref[...], wj_bw_ref[...], b_bw_ref[...]

    aggr_w = aggr_w_ref[...].astype(jnp.bfloat16)     # MXU operands in bf16, f32 accumulation
    aggr_b = aggr_b_ref[...]
    gru_wfw = gru_wfw_ref[...].astype(jnp.bfloat16)
    gru_wbw = gru_wbw_ref[...].astype(jnp.bfloat16)
    gru_whh = gru_whh_ref[...].astype(jnp.bfloat16)
    gru_bhh = gru_bhh_ref[...]

    # x @ W_x + b_ih is round-invariant -> hoisted out of the loop.
    gx = jnp.dot(x, gru_wx_ref[...], preferred_element_type=jnp.float32) + gru_bih_ref[...]  # (N, 3H)

    def attn(h_f32, hj_f32, hj_bf16, bias, has_in, wi, wj, b):
        # width-1 scores on VPU + lane reduction (frees the MXU for alpha @ hj)
        s_i = jnp.sum(h_f32 * wi, axis=-1, keepdims=True)     # (N, 1)
        s_j = jnp.sum(hj_f32 * wj, axis=-1, keepdims=True)    # (N, 1)
        e = s_i + s_j.T + b + bias                            # (N, N)
        m = jnp.max(e, axis=1, keepdims=True)
        p = jnp.exp(e - m)                                    # masked entries already ~0
        denom = jnp.sum(p, axis=1, keepdims=True)             # >= 1 when row has neighbors
        alpha = p * pl.reciprocal(jnp.maximum(denom, 1e-20), approx=True)
        msg = jnp.dot(alpha.astype(jnp.bfloat16), hj_bf16,
                      preferred_element_type=jnp.float32)     # (N, H)
        # nodes with no in-edges aggregate to exactly zero (matches PyG scatter-softmax)
        return msg * has_in

    def round_body(_, h):
        h_bf = h.astype(jnp.bfloat16)
        # shared AGNNConv mlp: computed once per round, reused by both directions
        hj = jnp.dot(h_bf, aggr_w, preferred_element_type=jnp.float32) + aggr_b   # (N, H)
        hj_bf = hj.astype(jnp.bfloat16)

        fw_msg = attn(h, hj, hj_bf, bias_fw, has_in_fw, wi_fw, wj_fw, b_fw)
        bw_msg = attn(h, hj, hj_bf, bias_bw, has_in_bw, wi_bw, wj_bw, b_bw)

        # GRU: gi = concat([fw, bw, x]) @ W_ih + b_ih, with W_ih split into row blocks
        gi = (gx
              + jnp.dot(fw_msg.astype(jnp.bfloat16), gru_wfw, preferred_element_type=jnp.float32)
              + jnp.dot(bw_msg.astype(jnp.bfloat16), gru_wbw, preferred_element_type=jnp.float32))
        gh = jnp.dot(h_bf, gru_whh, preferred_element_type=jnp.float32) + gru_bhh

        i_r, i_z, i_n = gi[:, :H], gi[:, H:2 * H], gi[:, 2 * H:]
        h_r, h_z, h_n = gh[:, :H], gh[:, H:2 * H], gh[:, 2 * H:]
        r = jax.nn.sigmoid(i_r + h_r)
        z = jax.nn.sigmoid(i_z + h_z)
        n = jnp.tanh(i_n + r * h_n)
        return (1.0 - z) * n + z * h

    h = jnp.broadcast_to(h0_ref[...], (N, H))
    h = lax.fori_loop(0, num_rounds, round_body, h)

    # ---- value head epilogue: Linear(H+2,128) -> ReLU -> Linear(128, out_dim) ----
    # (the (cp_idx, cp_tot) extra features were folded into vn_b1 on the host side)
    hdn = jnp.dot(h, vn_w1_ref[...], preferred_element_type=jnp.float32) + vn_b1_ref[...]
    hdn = jnp.maximum(hdn, 0.0)
    out_ref[...] = jnp.dot(hdn, vn_w2_ref[...], preferred_element_type=jnp.float32) + vn_b2_ref[...]


def _vmem_limit_bytes(N, H, Dx):
    # a handful of (N,N) f32 temporaries dominate; 2x headroom, clamped to
    # [32 MiB, 56 MiB] so we stay under v7x's 64 MiB physical VMEM.
    est = 4 * (8 * N * N + 16 * N * H + 2 * N * Dx + 10 * H * H + N * 128 + 256 * H)
    return int(min(max(2 * est, 32 << 20), 56 << 20))


# ----------------------------------------------------------------------------------
# Full forward (one fused pallas_call; wrapper only reshuffles parameters)
# ----------------------------------------------------------------------------------
@functools.partial(jax.jit, static_argnames=("num_rounds",))
def nonlevel_attn_gnn_forward(params, x, adj_fw, cp_idx, cp_tot, num_rounds):
    N, Dx = x.shape
    H = params["emd_b"].shape[0]
    out_dim = params["vn_w2_t"].shape[1]

    # h_init = emd_int(ones(1)), broadcast over nodes inside the kernel
    h0 = (params["emd_w"][:, 0] + params["emd_b"]).astype(jnp.float32)[None, :]   # (1, H)

    # split the GRU input weight (2H+Dx, 3H) into fw-msg / bw-msg / x row blocks
    w_fw_t = params["gru_wih_t"][:H]
    w_bw_t = params["gru_wih_t"][H:2 * H]
    w_x_t = params["gru_wih_t"][2 * H:]

    # fold the (cp_idx, cp_tot) extra features into the first value-net bias
    vn_w1_h = params["vn_w1_t"][:H]                                                # (H, 128)
    b1_eff = (params["vn_b1"]
              + cp_idx * params["vn_w1_t"][H:H + 1]
              + cp_tot * params["vn_w1_t"][H + 1:H + 2])                           # (1, 128)

    # attention score weights as lane rows (VPU mul + lane-reduce instead of width-1 matmul)
    wi_fw = params["attn_fw_wi"].T
    wj_fw = params["attn_fw_wj"].T
    wi_bw = params["attn_bw_wi"].T
    wj_bw = params["attn_bw_wj"].T

    # TODO(synk): subgraph(G.forward_index/backward_index, ...) is assumed to keep all
    # edges (non-level model => index covers every node), so no edge filtering here.
    args = (x, adj_fw, h0,
            params["aggr_w_t"], params["aggr_b"],
            wi_fw, wj_fw, params["attn_fw_b"],
            wi_bw, wj_bw, params["attn_bw_b"],
            w_fw_t, w_bw_t, w_x_t, params["gru_whh_t"],
            params["gru_bih"], params["gru_bhh"],
            vn_w1_h, b1_eff, params["vn_w2_t"], params["vn_b2"])

    pred = pl.pallas_call(
        functools.partial(_fused_forward_kernel, num_rounds=num_rounds),
        out_shape=jax.ShapeDtypeStruct((N, out_dim), jnp.float32),
        in_specs=[_full_spec(a.shape) for a in args],
        out_specs=_full_spec((N, out_dim)),
        compiler_params=pltpu.CompilerParams(
            vmem_limit_bytes=_vmem_limit_bytes(N, H, Dx)),
    )(*args)
    return [pred]   # forward() returns a list of preds


def init_params(key, dim_hidden, dim_node_feature, output_dim=2):
    H, Dx = dim_hidden, dim_node_feature
    ks = jax.random.split(key, 16)
    s = 0.1
    p = {
        # emd_int: Linear(1, H)
        "emd_w": s * jax.random.normal(ks[0], (H, 1), jnp.float32),
        "emd_b": s * jax.random.normal(ks[1], (H,), jnp.float32),
        # shared aggregation mlp: Linear(H, H)  (stored transposed)
        "aggr_w_t": s * jax.random.normal(ks[2], (H, H), jnp.float32),
        "aggr_b": s * jax.random.normal(ks[3], (1, H), jnp.float32),
        # attn_lin forward / backward: Linear(2H, 1), split into x_i / h_j halves
        "attn_fw_wi": s * jax.random.normal(ks[4], (H, 1), jnp.float32),
        "attn_fw_wj": s * jax.random.normal(ks[5], (H, 1), jnp.float32),
        "attn_fw_b": s * jax.random.normal(ks[6], (1, 1), jnp.float32),
        "attn_bw_wi": s * jax.random.normal(ks[7], (H, 1), jnp.float32),
        "attn_bw_wj": s * jax.random.normal(ks[8], (H, 1), jnp.float32),
        "attn_bw_b": s * jax.random.normal(ks[9], (1, 1), jnp.float32),
        # GRU(2H + Dx -> H), torch gate order (r, z, n); stored transposed
        "gru_wih_t": s * jax.random.normal(ks[10], (2 * H + Dx, 3 * H), jnp.float32),
        "gru_whh_t": s * jax.random.normal(ks[11], (H, 3 * H), jnp.float32),
        "gru_bih": s * jax.random.normal(ks[12], (1, 3 * H), jnp.float32),
        "gru_bhh": s * jax.random.normal(ks[13], (1, 3 * H), jnp.float32),
        # value_network: Linear(H+2,128) -> ReLU -> Linear(128, output_dim)
        "vn_w1_t": s * jax.random.normal(ks[14], (H + 2, 128), jnp.float32),
        "vn_b1": jnp.zeros((1, 128), jnp.float32),
        "vn_w2_t": s * jax.random.normal(ks[15], (128, output_dim), jnp.float32),
        "vn_b2": jnp.zeros((1, output_dim), jnp.float32),
    }
    return p


if __name__ == "__main__":
    key = jax.random.PRNGKey(0)
    N = 32                 # num_nodes
    H = 32                 # dim_hidden
    Dx = 4                 # dim_node_feature
    num_rounds = 2

    k_params, k_x, _ = jax.random.split(key, 3)
    params = init_params(k_params, H, Dx)

    # node features (G.x)
    x = jax.random.normal(k_x, (N, Dx), jnp.float32)

    # deterministic DAG-like edge list: i -> i+1 and i -> i+3
    src = jnp.concatenate([jnp.arange(N - 1), jnp.arange(N - 3)])
    dst = jnp.concatenate([jnp.arange(1, N), jnp.arange(3, N)])
    # forward aggregation: node i (target) gathers from sources j of edges j -> i
    adj_fw = jnp.zeros((N, N), jnp.float32).at[dst, src].set(1.0)

    preds = nonlevel_attn_gnn_forward(params, x, adj_fw,
                                      cp_idx=3.0, cp_tot=7.0,
                                      num_rounds=num_rounds)
    out = jax.block_until_ready(preds[0])
    assert out.shape == (N, 2) and jnp.all(jnp.isfinite(out))
    print("KERNEL_OK")
</pallas_src>

<mosaic_0001>
module attributes {stable_mosaic.version = 11 : i64} {
  func.func @_fused_forward_kernel(%arg0: memref<32x4xf32, #tpu.memory_space<vmem>>, %arg1: memref<32x32xf32, #tpu.memory_space<vmem>>, %arg2: memref<1x32xf32, #tpu.memory_space<vmem>>, %arg3: memref<32x32xf32, #tpu.memory_space<vmem>>, %arg4: memref<1x32xf32, #tpu.memory_space<vmem>>, %arg5: memref<1x32xf32, #tpu.memory_space<vmem>>, %arg6: memref<1x32xf32, #tpu.memory_space<vmem>>, %arg7: memref<1x1xf32, #tpu.memory_space<vmem>>, %arg8: memref<1x32xf32, #tpu.memory_space<vmem>>, %arg9: memref<1x32xf32, #tpu.memory_space<vmem>>, %arg10: memref<1x1xf32, #tpu.memory_space<vmem>>, %arg11: memref<32x96xf32, #tpu.memory_space<vmem>>, %arg12: memref<32x96xf32, #tpu.memory_space<vmem>>, %arg13: memref<4x96xf32, #tpu.memory_space<vmem>>, %arg14: memref<32x96xf32, #tpu.memory_space<vmem>>, %arg15: memref<1x96xf32, #tpu.memory_space<vmem>>, %arg16: memref<1x96xf32, #tpu.memory_space<vmem>>, %arg17: memref<32x128xf32, #tpu.memory_space<vmem>>, %arg18: memref<1x128xf32, #tpu.memory_space<vmem>>, %arg19: memref<128x2xf32, #tpu.memory_space<vmem>>, %arg20: memref<1x2xf32, #tpu.memory_space<vmem>>, %arg21: memref<32x2xf32, #tpu.memory_space<vmem>>) attributes {dimension_semantics = [], scalar_prefetch = 0 : i64, scratch_operands = 0 : i64, tpu.core_type = #tpu.core_type<tc>} {
    %c0 = arith.constant 0 : index
    %c0_0 = arith.constant 0 : index
    %0 = vector.load %arg0[%c0, %c0_0] : memref<32x4xf32, #tpu.memory_space<vmem>>, vector<32x4xf32>
    %c0_1 = arith.constant 0 : index
    %c0_2 = arith.constant 0 : index
    %1 = vector.load %arg1[%c0_1, %c0_2] : memref<32x32xf32, #tpu.memory_space<vmem>>, vector<32x32xf32>
    %2 = tpu.transpose %1, [1, 0] : vector<32x32xf32> -> vector<32x32xf32>
    %cst = arith.constant 5.000000e-01 : f32
    %3 = vector.broadcast %cst : f32 to vector<32x32xf32>
    %4 = arith.cmpf ogt, %1, %3 : vector<32x32xf32>
    %cst_3 = arith.constant 0.000000e+00 : f32
    %cst_4 = arith.constant -1.000000e+30 : f32
    %5 = vector.broadcast %cst_3 : f32 to vector<32x32xf32>
    %6 = vector.broadcast %cst_4 : f32 to vector<32x32xf32>
    %7 = arith.select %4, %5, %6 : vector<32x32xi1>, vector<32x32xf32>
    %cst_5 = arith.constant 5.000000e-01 : f32
    %8 = vector.broadcast %cst_5 : f32 to vector<32x32xf32>
    %9 = arith.cmpf ogt, %2, %8 : vector<32x32xf32>
    %cst_6 = arith.constant 0.000000e+00 : f32
    %cst_7 = arith.constant -1.000000e+30 : f32
    %10 = vector.broadcast %cst_6 : f32 to vector<32x32xf32>
    %11 = vector.broadcast %cst_7 : f32 to vector<32x32xf32>
    %12 = arith.select %9, %10, %11 : vector<32x32xi1>, vector<32x32xf32>
    %cst_8 = arith.constant dense<0.000000e+00> : vector<32xf32>
    %13 = vector.multi_reduction <add>, %1, %cst_8 [1] : vector<32x32xf32> to vector<32xf32>
    %14 = vector.shape_cast %13 : vector<32xf32> to vector<32x1xf32>
    %cst_9 = arith.constant 5.000000e-01 : f32
    %15 = vector.broadcast %cst_9 : f32 to vector<32x1xf32>
    %16 = arith.cmpf ogt, %14, %15 : vector<32x1xf32>
    %17 = arith.extui %16 : vector<32x1xi1> to vector<32x1xi32>
    %18 = arith.sitofp %17 : vector<32x1xi32> to vector<32x1xf32>
    %cst_10 = arith.constant dense<0.000000e+00> : vector<32xf32>
    %19 = vector.multi_reduction <add>, %2, %cst_10 [1] : vector<32x32xf32> to vector<32xf32>
    %20 = vector.shape_cast %19 : vector<32xf32> to vector<32x1xf32>
    %cst_11 = arith.constant 5.000000e-01 : f32
    %21 = vector.broadcast %cst_11 : f32 to vector<32x1xf32>
    %22 = arith.cmpf ogt, %20, %21 : vector<32x1xf32>
    %23 = arith.extui %22 : vector<32x1xi1> to vector<32x1xi32>
    %24 = arith.sitofp %23 : vector<32x1xi32> to vector<32x1xf32>
    %c0_12 = arith.constant 0 : index
    %c0_13 = arith.constant 0 : index
    %25 = vector.load %arg5[%c0_12, %c0_13] : memref<1x32xf32, #tpu.memory_space<vmem>>, vector<1x32xf32>
    %c0_14 = arith.constant 0 : index
    %c0_15 = arith.constant 0 : index
    %26 = vector.load %arg6[%c0_14, %c0_15] : memref<1x32xf32, #tpu.memory_space<vmem>>, vector<1x32xf32>
    %c0_16 = arith.constant 0 : index
    %c0_17 = arith.constant 0 : index
    %27 = vector.load %arg7[%c0_16, %c0_17] : memref<1x1xf32, #tpu.memory_space<vmem>>, vector<1x1xf32>
    %c0_18 = arith.constant 0 : index
    %c0_19 = arith.constant 0 : index
    %28 = vector.load %arg8[%c0_18, %c0_19] : memref<1x32xf32, #tpu.memory_space<vmem>>, vector<1x32xf32>
    %c0_20 = arith.constant 0 : index
    %c0_21 = arith.constant 0 : index
    %29 = vector.load %arg9[%c0_20, %c0_21] : memref<1x32xf32, #tpu.memory_space<vmem>>, vector<1x32xf32>
    %c0_22 = arith.constant 0 : index
    %c0_23 = arith.constant 0 : index
    %30 = vector.load %arg10[%c0_22, %c0_23] : memref<1x1xf32, #tpu.memory_space<vmem>>, vector<1x1xf32>
    %c0_24 = arith.constant 0 : index
    %c0_25 = arith.constant 0 : index
    %31 = vector.load %arg3[%c0_24, %c0_25] : memref<32x32xf32, #tpu.memory_space<vmem>>, vector<32x32xf32>
    %32 = arith.truncf %31 : vector<32x32xf32> to vector<32x32xbf16>
    %c0_26 = arith.constant 0 : index
    %c0_27 = arith.constant 0 : index
    %33 = vector.load %arg4[%c0_26, %c0_27] : memref<1x32xf32, #tpu.memory_space<vmem>>, vector<1x32xf32>
    %c0_28 = arith.constant 0 : index
    %c0_29 = arith.constant 0 : index
    %34 = vector.load %arg11[%c0_28, %c0_29] : memref<32x96xf32, #tpu.memory_space<vmem>>, vector<32x96xf32>
    %35 = arith.truncf %34 : vector<32x96xf32> to vector<32x96xbf16>
    %c0_30 = arith.constant 0 : index
    %c0_31 = arith.constant 0 : index
    %36 = vector.load %arg12[%c0_30, %c0_31] : memref<32x96xf32, #tpu.memory_space<vmem>>, vector<32x96xf32>
    %37 = arith.truncf %36 : vector<32x96xf32> to vector<32x96xbf16>
    %c0_32 = arith.constant 0 : index
    %c0_33 = arith.constant 0 : index
    %38 = vector.load %arg14[%c0_32, %c0_33] : memref<32x96xf32, #tpu.memory_space<vmem>>, vector<32x96xf32>
    %39 = arith.truncf %38 : vector<32x96xf32> to vector<32x96xbf16>
    %c0_34 = arith.constant 0 : index
    %c0_35 = arith.constant 0 : index
    %40 = vector.load %arg16[%c0_34, %c0_35] : memref<1x96xf32, #tpu.memory_space<vmem>>, vector<1x96xf32>
    %c0_36 = arith.constant 0 : index
    %c0_37 = arith.constant 0 : index
    %41 = vector.load %arg13[%c0_36, %c0_37] : memref<4x96xf32, #tpu.memory_space<vmem>>, vector<4x96xf32>
    %cst_38 = arith.constant dense<0.000000e+00> : vector<32x96xf32>
    %42 = tpu.matmul %0, %41, %cst_38 {dimension_numbers = #tpu.dot_dimension_numbers<[1], [0], [0], [1], [0, 0, 1, 1], [], []>} : vector<32x4xf32>, vector<4x96xf32>, vector<32x96xf32> -> vector<32x96xf32>
    %c0_39 = arith.constant 0 : index
    %c0_40 = arith.constant 0 : index
    %43 = vector.load %arg15[%c0_39, %c0_40] : memref<1x96xf32, #tpu.memory_space<vmem>>, vector<1x96xf32>
    %44 = vector.broadcast %43 : vector<1x96xf32> to vector<32x96xf32>
    %45 = arith.addf %42, %44 : vector<32x96xf32>
    %c0_41 = arith.constant 0 : index
    %c0_42 = arith.constant 0 : index
    %46 = vector.load %arg2[%c0_41, %c0_42] : memref<1x32xf32, #tpu.memory_space<vmem>>, vector<1x32xf32>
    %47 = vector.shape_cast %46 : vector<1x32xf32> to vector<1x32xf32>
    %48 = vector.broadcast %47 : vector<1x32xf32> to vector<32x32xf32>
    %c0_i32 = arith.constant 0 : i32
    %c2_i32 = arith.constant 2 : i32
    %49 = arith.addi %c0_i32, %c2_i32 : i32
    %c1_i32 = arith.constant 1 : i32
    %50 = scf.for %arg22 = %c0_i32 to %49 step %c1_i32 iter_args(%arg23 = %48) -> (vector<32x32xf32>)  : i32 {
      %64 = arith.truncf %arg23 : vector<32x32xf32> to vector<32x32xbf16>
      %cst_56 = arith.constant dense<0.000000e+00> : vector<32x32xf32>
      %65 = tpu.matmul %64, %32, %cst_56 {dimension_numbers = #tpu.dot_dimension_numbers<[1], [0], [0], [1], [0, 0, 1, 1], [], []>} : vector<32x32xbf16>, vector<32x32xbf16>, vector<32x32xf32> -> vector<32x32xf32>
      %66 = vector.broadcast %33 : vector<1x32xf32> to vector<32x32xf32>
      %67 = arith.addf %65, %66 : vector<32x32xf32>
      %68 = arith.truncf %67 : vector<32x32xf32> to vector<32x32xbf16>
      %69 = vector.broadcast %25 : vector<1x32xf32> to vector<32x32xf32>
      %70 = arith.mulf %arg23, %69 : vector<32x32xf32>
      %cst_57 = arith.constant dense<0.000000e+00> : vector<32xf32>
      %71 = vector.multi_reduction <add>, %70, %cst_57 [1] : vector<32x32xf32> to vector<32xf32>
      %72 = vector.shape_cast %71 : vector<32xf32> to vector<32x1xf32>
      %73 = vector.broadcast %26 : vector<1x32xf32> to vector<32x32xf32>
      %74 = arith.mulf %67, %73 : vector<32x32xf32>
      %cst_58 = arith.constant dense<0.000000e+00> : vector<32xf32>
      %75 = vector.multi_reduction <add>, %74, %cst_58 [1] : vector<32x32xf32> to vector<32xf32>
      %76 = vector.shape_cast %75 : vector<32xf32> to vector<32x1xf32>
      %77 = tpu.transpose %76, [1, 0] : vector<32x1xf32> -> vector<1x32xf32>
      %78 = vector.broadcast %72 : vector<32x1xf32> to vector<32x32xf32>
      %79 = vector.broadcast %77 : vector<1x32xf32> to vector<32x32xf32>
      %80 = arith.addf %78, %79 : vector<32x32xf32>
      %81 = vector.broadcast %27 : vector<1x1xf32> to vector<32x32xf32>
      %82 = arith.addf %80, %81 : vector<32x32xf32>
      %83 = arith.addf %82, %7 : vector<32x32xf32>
      %cst_59 = arith.constant dense<0xFF800000> : vector<32xf32>
      %84 = vector.multi_reduction <maximumf>, %83, %cst_59 [1] : vector<32x32xf32> to vector<32xf32>
      %85 = vector.shape_cast %84 : vector<32xf32> to vector<32x1xf32>
      %86 = vector.broadcast %85 : vector<32x1xf32> to vector<32x32xf32>
      %87 = arith.subf %83, %86 : vector<32x32xf32>
      %88 = math.exp %87 : vector<32x32xf32>
      %cst_60 = arith.constant dense<0.000000e+00> : vector<32xf32>
      %89 = vector.multi_reduction <add>, %88, %cst_60 [1] : vector<32x32xf32> to vector<32xf32>
      %90 = vector.shape_cast %89 : vector<32xf32> to vector<32x1xf32>
      %cst_61 = arith.constant 9.99999968E-21 : f32
      %91 = vector.broadcast %cst_61 : f32 to vector<32x1xf32>
      %92 = arith.maximumf %90, %91 : vector<32x1xf32>
      %93 = tpu.reciprocal %92 {approx = true} : vector<32x1xf32> -> vector<32x1xf32>
      %94 = vector.broadcast %93 : vector<32x1xf32> to vector<32x32xf32>
      %95 = arith.mulf %88, %94 : vector<32x32xf32>
      %96 = arith.truncf %95 : vector<32x32xf32> to vector<32x32xbf16>
      %cst_62 = arith.constant dense<0.000000e+00> : vector<32x32xf32>
      %97 = tpu.matmul %96, %68, %cst_62 {dimension_numbers = #tpu.dot_dimension_numbers<[1], [0], [0], [1], [0, 0, 1, 1], [], []>} : vector<32x32xbf16>, vector<32x32xbf16>, vector<32x32xf32> -> vector<32x32xf32>
      %98 = vector.broadcast %18 : vector<32x1xf32> to vector<32x32xf32>
      %99 = arith.mulf %97, %98 : vector<32x32xf32>
      %100 = vector.broadcast %28 : vector<1x32xf32> to vector<32x32xf32>
      %101 = arith.mulf %arg23, %100 : vector<32x32xf32>
      %cst_63 = arith.constant dense<0.000000e+00> : vector<32xf32>
      %102 = vector.multi_reduction <add>, %101, %cst_63 [1] : vector<32x32xf32> to vector<32xf32>
      %103 = vector.shape_cast %102 : vector<32xf32> to vector<32x1xf32>
      %104 = vector.broadcast %29 : vector<1x32xf32> to vector<32x32xf32>
      %105 = arith.mulf %67, %104 : vector<32x32xf32>
      %cst_64 = arith.constant dense<0.000000e+00> : vector<32xf32>
      %106 = vector.multi_reduction <add>, %105, %cst_64 [1] : vector<32x32xf32> to vector<32xf32>
      %107 = vector.shape_cast %106 : vector<32xf32> to vector<32x1xf32>
      %108 = tpu.transpose %107, [1, 0] : vector<32x1xf32> -> vector<1x32xf32>
      %109 = vector.broadcast %103 : vector<32x1xf32> to vector<32x32xf32>
      %110 = vector.broadcast %108 : vector<1x32xf32> to vector<32x32xf32>
      %111 = arith.addf %109, %110 : vector<32x32xf32>
      %112 = vector.broadcast %30 : vector<1x1xf32> to vector<32x32xf32>
      %113 = arith.addf %111, %112 : vector<32x32xf32>
      %114 = arith.addf %113, %12 : vector<32x32xf32>
      %cst_65 = arith.constant dense<0xFF800000> : vector<32xf32>
      %115 = vector.multi_reduction <maximumf>, %114, %cst_65 [1] : vector<32x32xf32> to vector<32xf32>
      %116 = vector.shape_cast %115 : vector<32xf32> to vector<32x1xf32>
      %117 = vector.broadcast %116 : vector<32x1xf32> to vector<32x32xf32>
      %118 = arith.subf %114, %117 : vector<32x32xf32>
      %119 = math.exp %118 : vector<32x32xf32>
      %cst_66 = arith.constant dense<0.000000e+00> : vector<32xf32>
      %120 = vector.multi_reduction <add>, %119, %cst_66 [1] : vector<32x32xf32> to vector<32xf32>
      %121 = vector.shape_cast %120 : vector<32xf32> to vector<32x1xf32>
      %cst_67 = arith.constant 9.99999968E-21 : f32
      %122 = vector.broadcast %cst_67 : f32 to vector<32x1xf32>
      %123 = arith.maximumf %121, %122 : vector<32x1xf32>
      %124 = tpu.reciprocal %123 {approx = true} : vector<32x1xf32> -> vector<32x1xf32>
      %125 = vector.broadcast %124 : vector<32x1xf32> to vector<32x32xf32>
      %126 = arith.mulf %119, %125 : vector<32x32xf32>
      %127 = arith.truncf %126 : vector<32x32xf32> to vector<32x32xbf16>
      %cst_68 = arith.constant dense<0.000000e+00> : vector<32x32xf32>
      %128 = tpu.matmul %127, %68, %cst_68 {dimension_numbers = #tpu.dot_dimension_numbers<[1], [0], [0], [1], [0, 0, 1, 1], [], []>} : vector<32x32xbf16>, vector<32x32xbf16>, vector<32x32xf32> -> vector<32x32xf32>
      %129 = vector.broadcast %24 : vector<32x1xf32> to vector<32x32xf32>
      %130 = arith.mulf %128, %129 : vector<32x32xf32>
      %131 = arith.truncf %99 : vector<32x32xf32> to vector<32x32xbf16>
      %cst_69 = arith.constant dense<0.000000e+00> : vector<32x96xf32>
      %132 = tpu.matmul %131, %35, %cst_69 {dimension_numbers = #tpu.dot_dimension_numbers<[1], [0], [0], [1], [0, 0, 1, 1], [], []>} : vector<32x32xbf16>, vector<32x96xbf16>, vector<32x96xf32> -> vector<32x96xf32>
      %133 = arith.addf %45, %132 : vector<32x96xf32>
      %134 = arith.truncf %130 : vector<32x32xf32> to vector<32x32xbf16>
      %cst_70 = arith.constant dense<0.000000e+00> : vector<32x96xf32>
      %135 = tpu.matmul %134, %37, %cst_70 {dimension_numbers = #tpu.dot_dimension_numbers<[1], [0], [0], [1], [0, 0, 1, 1], [], []>} : vector<32x32xbf16>, vector<32x96xbf16>, vector<32x96xf32> -> vector<32x96xf32>
      %136 = arith.addf %133, %135 : vector<32x96xf32>
      %cst_71 = arith.constant dense<0.000000e+00> : vector<32x96xf32>
      %137 = tpu.matmul %64, %39, %cst_71 {dimension_numbers = #tpu.dot_dimension_numbers<[1], [0], [0], [1], [0, 0, 1, 1], [], []>} : vector<32x32xbf16>, vector<32x96xbf16>, vector<32x96xf32> -> vector<32x96xf32>
      %138 = vector.broadcast %40 : vector<1x96xf32> to vector<32x96xf32>
      %139 = arith.addf %137, %138 : vector<32x96xf32>
      %140 = vector.extract_strided_slice %136 {offsets = [0, 0], sizes = [32, 32], strides = [1, 1]} : vector<32x96xf32> to vector<32x32xf32>
      %141 = vector.extract_strided_slice %136 {offsets = [0, 32], sizes = [32, 32], strides = [1, 1]} : vector<32x96xf32> to vector<32x32xf32>
      %142 = vector.extract_strided_slice %136 {offsets = [0, 64], sizes = [32, 32], strides = [1, 1]} : vector<32x96xf32> to vector<32x32xf32>
      %143 = vector.extract_strided_slice %139 {offsets = [0, 0], sizes = [32, 32], strides = [1, 1]} : vector<32x96xf32> to vector<32x32xf32>
      %144 = vector.extract_strided_slice %139 {offsets = [0, 32], sizes = [32, 32], strides = [1, 1]} : vector<32x96xf32> to vector<32x32xf32>
      %145 = vector.extract_strided_slice %139 {offsets = [0, 64], sizes = [32, 32], strides = [1, 1]} : vector<32x96xf32> to vector<32x32xf32>
      %146 = arith.addf %140, %143 : vector<32x32xf32>
      %147 = arith.negf %146 : vector<32x32xf32>
      %148 = math.exp %147 : vector<32x32xf32>
      %cst_72 = arith.constant 1.000000e+00 : f32
      %149 = vector.broadcast %cst_72 : f32 to vector<32x32xf32>
      %150 = arith.addf %149, %148 : vector<32x32xf32>
      %151 = arith.divf %149, %150 : vector<32x32xf32>
      %152 = arith.addf %141, %144 : vector<32x32xf32>
      %153 = arith.negf %152 : vector<32x32xf32>
      %154 = math.exp %153 : vector<32x32xf32>
      %cst_73 = arith.constant 1.000000e+00 : f32
      %155 = vector.broadcast %cst_73 : f32 to vector<32x32xf32>
      %156 = arith.addf %155, %154 : vector<32x32xf32>
      %157 = arith.divf %155, %156 : vector<32x32xf32>
      %158 = arith.mulf %151, %145 : vector<32x32xf32>
      %159 = arith.addf %142, %158 : vector<32x32xf32>
      %160 = math.tanh %159 : vector<32x32xf32>
      %cst_74 = arith.constant 1.000000e+00 : f32
      %161 = vector.broadcast %cst_74 : f32 to vector<32x32xf32>
      %162 = arith.subf %161, %157 : vector<32x32xf32>
      %163 = arith.mulf %162, %160 : vector<32x32xf32>
      %164 = arith.mulf %157, %arg23 : vector<32x32xf32>
      %165 = arith.addf %163, %164 : vector<32x32xf32>
      scf.yield %165 : vector<32x32xf32>
    }
    %c0_43 = arith.constant 0 : index
    %c0_44 = arith.constant 0 : index
    %51 = vector.load %arg17[%c0_43, %c0_44] : memref<32x128xf32, #tpu.memory_space<vmem>>, vector<32x128xf32>
    %cst_45 = arith.constant dense<0.000000e+00> : vector<32x128xf32>
    %52 = tpu.matmul %50, %51, %cst_45 {dimension_numbers = #tpu.dot_dimension_numbers<[1], [0], [0], [1], [0, 0, 1, 1], [], []>} : vector<32x32xf32>, vector<32x128xf32>, vector<32x128xf32> -> vector<32x128xf32>
    %c0_46 = arith.constant 0 : index
    %c0_47 = arith.constant 0 : index
    %53 = vector.load %arg18[%c0_46, %c0_47] : memref<1x128xf32, #tpu.memory_space<vmem>>, vector<1x128xf32>
    %54 = vector.broadcast %53 : vector<1x128xf32> to vector<32x128xf32>
    %55 = arith.addf %52, %54 : vector<32x128xf32>
    %cst_48 = arith.constant 0.000000e+00 : f32
    %56 = vector.broadcast %cst_48 : f32 to vector<32x128xf32>
    %57 = arith.maximumf %55, %56 : vector<32x128xf32>
    %c0_49 = arith.constant 0 : index
    %c0_50 = arith.constant 0 : index
    %58 = vector.load %arg19[%c0_49, %c0_50] : memref<128x2xf32, #tpu.memory_space<vmem>>, vector<128x2xf32>
    %cst_51 = arith.constant dense<0.000000e+00> : vector<32x2xf32>
    %59 = tpu.matmul %57, %58, %cst_51 {dimension_numbers = #tpu.dot_dimension_numbers<[1], [0], [0], [1], [0, 0, 1, 1], [], []>} : vector<32x128xf32>, vector<128x2xf32>, vector<32x2xf32> -> vector<32x2xf32>
    %c0_52 = arith.constant 0 : index
    %c0_53 = arith.constant 0 : index
    %60 = vector.load %arg20[%c0_52, %c0_53] : memref<1x2xf32, #tpu.memory_space<vmem>>, vector<1x2xf32>
    %61 = vector.broadcast %60 : vector<1x2xf32> to vector<32x2xf32>
    %62 = arith.addf %59, %61 : vector<32x2xf32>
    %c0_54 = arith.constant 0 : index
    %c0_55 = arith.constant 0 : index
    %63 = vector.load %arg21[%c0_54, %c0_55] : memref<32x2xf32, #tpu.memory_space<vmem>>, vector<32x2xf32>
    tpu.vector_store %arg21[%c0_54, %c0_55], %62 {strides = array<i32>} : memref<32x2xf32, #tpu.memory_space<vmem>>, vector<32x2xf32>,
    return
  }
}

</mosaic_0001>

<llo_original>
// kernel: nonlevel_attn_gnn_forward.1
$region0: #{nonlevel_attn_gnn_forward.1}
  #allocation0 [shape = 'u32[]', space=smem, size = 0x4, offset = 0x4, fixed_abs, tag = 'smem constant byte address 0x4 - core index']
  #allocation1 [shape = 'u32[144,128]{1,0:T(1,128)}', space=vmem, size = 0x12000, scoped, tag = 'internal scratch']
  #allocation2 [shape = 'f32[1,1]{1,0:T(1,128)S(1)}', space=vmem, size = 0x200, scoped, tag = 'scoped memory for nonlevel_attn_gnn_forward.1']
  #allocation3 [shape = 'f32[1,1]{1,0:T(1,128)S(1)}', space=vmem, size = 0x200, scoped, tag = 'scoped memory for nonlevel_attn_gnn_forward.1']
  %s0 = inlined_call_operand.vmem [shape: f32[32,4], index: 0, kind: input, shape index: {}]
  %s1 = inlined_call_operand.vmem [shape: f32[32,32], index: 1, kind: input, shape index: {}]
  %s2 = inlined_call_operand.vmem [shape: f32[1,32], index: 2, kind: input, shape index: {}]
  %s3 = inlined_call_operand.vmem [shape: f32[32,32], index: 3, kind: input, shape index: {}]
  %s4 = inlined_call_operand.vmem [shape: f32[1,32], index: 4, kind: input, shape index: {}]
  %s5 = inlined_call_operand.vmem [shape: f32[1,32], index: 5, kind: input, shape index: {}]
  %s6 = inlined_call_operand.vmem [shape: f32[1,32], index: 6, kind: input, shape index: {}]
  %s7 = inlined_call_operand.<no memory space> [shape: f32[1,1], index: 7, kind: input, shape index: {}]
  %s8 = inlined_call_operand.vmem [shape: f32[1,32], index: 8, kind: input, shape index: {}]
  %s9 = inlined_call_operand.vmem [shape: f32[1,32], index: 9, kind: input, shape index: {}]
  %s10 = inlined_call_operand.<no memory space> [shape: f32[1,1], index: 10, kind: input, shape index: {}]
  %s11 = inlined_call_operand.vmem [shape: f32[32,96], index: 11, kind: input, shape index: {}]
  %s12 = inlined_call_operand.vmem [shape: f32[32,96], index: 12, kind: input, shape index: {}]
  %s13 = inlined_call_operand.vmem [shape: f32[4,96], index: 13, kind: input, shape index: {}]
  %s14 = inlined_call_operand.vmem [shape: f32[32,96], index: 14, kind: input, shape index: {}]
  %s15 = inlined_call_operand.vmem [shape: f32[1,96], index: 15, kind: input, shape index: {}]
  %s16 = inlined_call_operand.vmem [shape: f32[1,96], index: 16, kind: input, shape index: {}]
  %s17 = inlined_call_operand.vmem [shape: f32[32,128], index: 17, kind: input, shape index: {}]
  %s18 = inlined_call_operand.vmem [shape: f32[1,128], index: 18, kind: input, shape index: {}]
  %s19 = inlined_call_operand.vmem [shape: f32[128,2], index: 19, kind: input, shape index: {}]
  %s20 = inlined_call_operand.vmem [shape: f32[1,2], index: 20, kind: input, shape index: {}]
  %s21 = inlined_call_operand.vmem [shape: f32[32,2], index: 21, kind: output, shape index: {}]
  %s22 = sld [smem:[#allocation0]]
  $region101: #{nonlevel_attn_gnn_forward.1} parent=0
    _
  %s24 = ssub.s32 1, %s22
  %s25 = scalar_select 0, %s24, %s22
  %v26 = vstv %s7
  %27 = vst [vmem:[#allocation2] sm:$0x1] %v26
  %v28 = vstv %s10
  %29 = vst [vmem:[#allocation3] sm:$0x1] %v28
  // Predicated region
  $region2: #{nonlevel_attn_gnn_forward.1} parent=0 // pred_check
    _
  $region3: #{nonlevel_attn_gnn_forward.1} parent=0 // pred_check_branch
    %31 = sbr.rel (0) target = $region5
  $region4: #{nonlevel_attn_gnn_forward.1} parent=0 // pred_region
    _
  $region5: #{nonlevel_attn_gnn_forward.1} parent=0 // pred_fallthru
    _
  // Predicated region
  $region6: #{nonlevel_attn_gnn_forward.1} parent=0 // pred_check
    _
  $region7: #{nonlevel_attn_gnn_forward.1} parent=0 // pred_check_branch
    %33 = sbr.rel (0) target = $region9
  $region8: #{nonlevel_attn_gnn_forward.1} parent=0 // pred_region
    _
  $region9: #{nonlevel_attn_gnn_forward.1} parent=0 // pred_fallthru
    _
  // Predicated region
  $region10: #{nonlevel_attn_gnn_forward.1} parent=0 // pred_check
    _
  $region11: #{nonlevel_attn_gnn_forward.1} parent=0 // pred_check_branch
    %35 = sbr.rel (0) target = $region13
  $region12: #{nonlevel_attn_gnn_forward.1} parent=0 // pred_region
    _
  $region13: #{nonlevel_attn_gnn_forward.1} parent=0 // pred_fallthru
    _
  // Predicated region
  $region14: #{nonlevel_attn_gnn_forward.1} parent=0 // pred_check
    _
  $region15: #{nonlevel_attn_gnn_forward.1} parent=0 // pred_check_branch
    %37 = sbr.rel (0) target = $region17
  $region16: #{nonlevel_attn_gnn_forward.1} parent=0 // pred_region
    _
  $region17: #{nonlevel_attn_gnn_forward.1} parent=0 // pred_fallthru
    _
  // Predicated region
  $region18: #{nonlevel_attn_gnn_forward.1} parent=0 // pred_check
    _
  $region19: #{nonlevel_attn_gnn_forward.1} parent=0 // pred_check_branch
    %39 = sbr.rel (0) target = $region21
  $region20: #{nonlevel_attn_gnn_forward.1} parent=0 // pred_region
    _
  $region21: #{nonlevel_attn_gnn_forward.1} parent=0 // pred_fallthru
    _
  // Predicated region
  $region22: #{nonlevel_attn_gnn_forward.1} parent=0 // pred_check
    _
  $region23: #{nonlevel_attn_gnn_forward.1} parent=0 // pred_check_branch
    %41 = sbr.rel (0) target = $region25
  $region24: #{nonlevel_attn_gnn_forward.1} parent=0 // pred_region
    _
  $region25: #{nonlevel_attn_gnn_forward.1} parent=0 // pred_fallthru
    _
  // Predicated region
  $region26: #{nonlevel_attn_gnn_forward.1} parent=0 // pred_check
    _
  $region27: #{nonlevel_attn_gnn_forward.1} parent=0 // pred_check_branch
    %43 = sbr.rel (0) target = $region29
  $region28: #{nonlevel_attn_gnn_forward.1} parent=0 // pred_region
    _
  $region29: #{nonlevel_attn_gnn_forward.1} parent=0 // pred_fallthru
    _
  // Predicated region
  $region30: #{nonlevel_attn_gnn_forward.1} parent=0 // pred_check
    _
  $region31: #{nonlevel_attn_gnn_forward.1} parent=0 // pred_check_branch
    %45 = sbr.rel (0) target = $region33
  $region32: #{nonlevel_attn_gnn_forward.1} parent=0 // pred_region
    _
  $region33: #{nonlevel_attn_gnn_forward.1} parent=0 // pred_fallthru
    _
  // Predicated region
  $region34: #{nonlevel_attn_gnn_forward.1} parent=0 // pred_check
    _
  $region35: #{nonlevel_attn_gnn_forward.1} parent=0 // pred_check_branch
    %47 = sbr.rel (0) target = $region37
  $region36: #{nonlevel_attn_gnn_forward.1} parent=0 // pred_region
    _
  $region37: #{nonlevel_attn_gnn_forward.1} parent=0 // pred_fallthru
    _
  // Predicated region
  $region38: #{nonlevel_attn_gnn_forward.1} parent=0 // pred_check
    _
  $region39: #{nonlevel_attn_gnn_forward.1} parent=0 // pred_check_branch
    %49 = sbr.rel (0) target = $region41
  $region40: #{nonlevel_attn_gnn_forward.1} parent=0 // pred_region
    _
  $region41: #{nonlevel_attn_gnn_forward.1} parent=0 // pred_fallthru
    _
  // Predicated region
  $region42: #{nonlevel_attn_gnn_forward.1} parent=0 // pred_check
    _
  $region43: #{nonlevel_attn_gnn_forward.1} parent=0 // pred_check_branch
    %51 = sbr.rel (0) target = $region45
  $region44: #{nonlevel_attn_gnn_forward.1} parent=0 // pred_region
    _
  $region45: #{nonlevel_attn_gnn_forward.1} parent=0 // pred_fallthru
    _
  // Predicated region
  $region46: #{nonlevel_attn_gnn_forward.1} parent=0 // pred_check
    _
  $region47: #{nonlevel_attn_gnn_forward.1} parent=0 // pred_check_branch
    %53 = sbr.rel (0) target = $region49
  $region48: #{nonlevel_attn_gnn_forward.1} parent=0 // pred_region
    _
  $region49: #{nonlevel_attn_gnn_forward.1} parent=0 // pred_fallthru
    _
  // Predicated region
  $region50: #{nonlevel_attn_gnn_forward.1} parent=0 // pred_check
    _
  $region51: #{nonlevel_attn_gnn_forward.1} parent=0 // pred_check_branch
    %55 = sbr.rel (0) target = $region53
  $region52: #{nonlevel_attn_gnn_forward.1} parent=0 // pred_region
    _
  $region53: #{nonlevel_attn_gnn_forward.1} parent=0 // pred_fallthru
    _
  // Predicated region
  $region54: #{nonlevel_attn_gnn_forward.1} parent=0 // pred_check
    _
  $region55: #{nonlevel_attn_gnn_forward.1} parent=0 // pred_check_branch
    %57 = sbr.rel (0) target = $region57
  $region56: #{nonlevel_attn_gnn_forward.1} parent=0 // pred_region
    _
  $region57: #{nonlevel_attn_gnn_forward.1} parent=0 // pred_fallthru
    _
  // Predicated region
  $region58: #{nonlevel_attn_gnn_forward.1} parent=0 // pred_check
    _
  $region59: #{nonlevel_attn_gnn_forward.1} parent=0 // pred_check_branch
    %59 = sbr.rel (0) target = $region61
  $region60: #{nonlevel_attn_gnn_forward.1} parent=0 // pred_region
    _
  $region61: #{nonlevel_attn_gnn_forward.1} parent=0 // pred_fallthru
    _
  // Predicated region
  $region62: #{nonlevel_attn_gnn_forward.1} parent=0 // pred_check
    _
  $region63: #{nonlevel_attn_gnn_forward.1} parent=0 // pred_check_branch
    %61 = sbr.rel (0) target = $region65
  $region64: #{nonlevel_attn_gnn_forward.1} parent=0 // pred_region
    _
  $region65: #{nonlevel_attn_gnn_forward.1} parent=0 // pred_fallthru
    _
  // Predicated region
  $region66: #{nonlevel_attn_gnn_forward.1} parent=0 // pred_check
    _
  $region67: #{nonlevel_attn_gnn_forward.1} parent=0 // pred_check_branch
    %63 = sbr.rel (0) target = $region69
  $region68: #{nonlevel_attn_gnn_forward.1} parent=0 // pred_region
    _
  $region69: #{nonlevel_attn_gnn_forward.1} parent=0 // pred_fallthru
    _
  // Predicated region
  $region70: #{nonlevel_attn_gnn_forward.1} parent=0 // pred_check
    _
  $region71: #{nonlevel_attn_gnn_forward.1} parent=0 // pred_check_branch
    %65 = sbr.rel (0) target = $region73
  $region72: #{nonlevel_attn_gnn_forward.1} parent=0 // pred_region
    _
  $region73: #{nonlevel_attn_gnn_forward.1} parent=0 // pred_fallthru
    _
  // Predicated region
  $region74: #{nonlevel_attn_gnn_forward.1} parent=0 // pred_check
    _
  $region75: #{nonlevel_attn_gnn_forward.1} parent=0 // pred_check_branch
    %67 = sbr.rel (0) target = $region77
  $region76: #{nonlevel_attn_gnn_forward.1} parent=0 // pred_region
    _
  $region77: #{nonlevel_attn_gnn_forward.1} parent=0 // pred_fallthru
    _
  // Predicated region
  $region78: #{nonlevel_attn_gnn_forward.1} parent=0 // pred_check
    _
  $region79: #{nonlevel_attn_gnn_forward.1} parent=0 // pred_check_branch
    %69 = sbr.rel (0) target = $region81
  $region80: #{nonlevel_attn_gnn_forward.1} parent=0 // pred_region
    _
  $region81: #{nonlevel_attn_gnn_forward.1} parent=0 // pred_fallthru
    _
  // Predicated region
  $region82: #{nonlevel_attn_gnn_forward.1} parent=0 // pred_check
    _
  $region83: #{nonlevel_attn_gnn_forward.1} parent=0 // pred_check_branch
    %71 = sbr.rel (0) target = $region85
  $region84: #{nonlevel_attn_gnn_forward.1} parent=0 // pred_region
    _
  $region85: #{nonlevel_attn_gnn_forward.1} parent=0 // pred_fallthru
    _
  %v73 = vld [vmem:[%s0] sm:$0xff]
  %v74 = vld [vmem:[%s0 + $0x8] sm:$0xff]
  %v75 = vld [vmem:[%s0 + $0x10] sm:$0xff]
  %v76 = vld [vmem:[%s0 + $0x18] sm:$0xff]
  %v77 = vld [vmem:[%s1] sm:$0xff]
  %v78 = vld [vmem:[%s1 + $0x8] sm:$0xff]
  %v79 = vld [vmem:[%s1 + $0x10] sm:$0xff]
  %v80 = vld [vmem:[%s1 + $0x18] sm:$0xff]
  %81 = vxpose.xlu0.b32.start [1/16] %v77, 128
  %82 = vxpose.xlu0.b32.cont [2/16] %v78, 128
  %83 = vxpose.xlu0.b32.cont [3/16] %v79, 128
  %84 = vxpose.xlu0.b32.cont [4/16] %v80, 128
  %85 = vxpose.xlu0.b32.cont [5/16] 0.0, 128
  %86 = vxpose.xlu0.b32.cont [6/16] 0.0, 128
  %87 = vxpose.xlu0.b32.cont [7/16] 0.0, 128
  %88 = vxpose.xlu0.b32.cont [8/16] 0.0, 128
  %89 = vxpose.xlu0.b32.cont [9/16] 0.0, 128
  %90 = vxpose.xlu0.b32.cont [10/16] 0.0, 128
  %91 = vxpose.xlu0.b32.cont [11/16] 0.0, 128
  %92 = vxpose.xlu0.b32.cont [12/16] 0.0, 128
  %93 = vxpose.xlu0.b32.cont [13/16] 0.0, 128
  %94 = vxpose.xlu0.b32.cont [14/16] 0.0, 128
  %95 = vxpose.xlu0.b32.cont [15/16] 0.0, 128
  %96 = vxpose.xlu0.b32.end [16/16] 0.0, 128
  %v97 = vpop.trf.xlu0
  %v98 = vpop.trf.xlu0
  %v99 = vpop.trf.xlu0
  %v100 = vpop.trf.xlu0
  %v101 = vpop.trf.xlu0
  %v102 = vpop.trf.xlu0
  %v103 = vpop.trf.xlu0
  %v104 = vpop.trf.xlu0
  %v105 = vpop.trf.xlu0
  %v106 = vpop.trf.xlu0
  %v107 = vpop.trf.xlu0
  %v108 = vpop.trf.xlu0
  %v109 = vpop.trf.xlu0
  %v110 = vpop.trf.xlu0
  %v111 = vpop.trf.xlu0
  %v112 = vpop.trf.xlu0
  %vm113 = vcmp.gt.f32.partialorder %v77, 0.5
  %vm114 = vcmp.gt.f32.partialorder %v78, 0.5
  %vm115 = vcmp.gt.f32.partialorder %v79, 0.5
  %vm116 = vcmp.gt.f32.partialorder %v80, 0.5
  %v117 = vsel %vm113, 0.0, -1e+30
  %v118 = vsel %vm114, 0.0, -1e+30
  %v119 = vsel %vm115, 0.0, -1e+30
  %v120 = vsel %vm116, 0.0, -1e+30
  %vm121 = vcmp.gt.f32.partialorder %v97, 0.5
  %vm122 = vcmp.gt.f32.partialorder %v98, 0.5
  %vm123 = vcmp.gt.f32.partialorder %v99, 0.5
  %vm124 = vcmp.gt.f32.partialorder %v100, 0.5
  %v125 = vsel %vm121, 0.0, -1e+30
  %v126 = vsel %vm122, 0.0, -1e+30
  %v127 = vsel %vm123, 0.0, -1e+30
  %v128 = vsel %vm124, 0.0, -1e+30
  %vm129 = vcmask 261120
  %v130 = vsel %vm129, %v77, 0.0
  %131 = vadd.xlane.f32.xlu0 %v130
  %v132 = vpop.xlane.xlu0 %131
  %v133 = vsel %vm129, %v78, 0.0
  %134 = vadd.xlane.f32.xlu0 %v133
  %v135 = vpop.xlane.xlu0 %134
  %v136 = vsel %vm129, %v79, 0.0
  %137 = vadd.xlane.f32.xlu0 %v136
  %v138 = vpop.xlane.xlu0 %137
  %v139 = vsel %vm129, %v80, 0.0
  %140 = vadd.xlane.f32.xlu0 %v139
  %v141 = vpop.xlane.xlu0 %140
  %vm142 = vcmp.gt.f32.partialorder %v132, 0.5
  %vm143 = vcmp.gt.f32.partialorder %v135, 0.5
  %vm144 = vcmp.gt.f32.partialorder %v138, 0.5
  %vm145 = vcmp.gt.f32.partialorder %v141, 0.5
  %v146 = vsel %vm142, 1, 0
  %v147 = vsel %vm143, 1, 0
  %v148 = vsel %vm144, 1, 0
  %v149 = vsel %vm145, 1, 0
  %v150 = vcvt.s32.f32 %v146
  %v151 = vcvt.s32.f32 %v147
  %v152 = vcvt.s32.f32 %v148
  %v153 = vcvt.s32.f32 %v149
  %v154 = vsel %vm129, %v97, 0.0
  %155 = vadd.xlane.f32.xlu0 %v154
  %v156 = vpop.xlane.xlu0 %155
  %v157 = vsel %vm129, %v98, 0.0
  %158 = vadd.xlane.f32.xlu0 %v157
  %v159 = vpop.xlane.xlu0 %158
  %v160 = vsel %vm129, %v99, 0.0
  %161 = vadd.xlane.f32.xlu0 %v160
  %v162 = vpop.xlane.xlu0 %161
  %v163 = vsel %vm129, %v100, 0.0
  %164 = vadd.xlane.f32.xlu0 %v163
  %v165 = vpop.xlane.xlu0 %164
  %vm166 = vcmp.gt.f32.partialorder %v156, 0.5
  %vm167 = vcmp.gt.f32.partialorder %v159, 0.5
  %vm168 = vcmp.gt.f32.partialorder %v162, 0.5
  %vm169 = vcmp.gt.f32.partialorder %v165, 0.5
  %v170 = vsel %vm166, 1, 0
  %v171 = vsel %vm167, 1, 0
  %v172 = vsel %vm168, 1, 0
  %v173 = vsel %vm169, 1, 0
  %v174 = vcvt.s32.f32 %v170
  %v175 = vcvt.s32.f32 %v171
  %v176 = vcvt.s32.f32 %v172
  %v177 = vcvt.s32.f32 %v173
  %v178 = vld [vmem:[%s5] sm:$0x1]
  %v179 = vld [vmem:[%s6] sm:$0x1]
  %v180 = vld [vmem:[#allocation2] sm:$0x1]
  %v181 = vld [vmem:[%s8] sm:$0x1]
  %v182 = vld [vmem:[%s9] sm:$0x1]
  %v183 = vld [vmem:[#allocation3] sm:$0x1]
  %v184 = vld [vmem:[%s3] sm:$0xff]
  %v185 = vld [vmem:[%s3 + $0x8] sm:$0xff]
  %v186 = vld [vmem:[%s3 + $0x10] sm:$0xff]
  %v187 = vld [vmem:[%s3 + $0x18] sm:$0xff]
  %v188 = vpack.c.bf16 %v185, %v184
  %v189 = vpack.c.bf16 %v187, %v186
  %v190 = vld [vmem:[%s4] sm:$0x1]
  %v191 = vld [vmem:[%s11] sm:$0xff]
  %v192 = vld [vmem:[%s11 + $0x8] sm:$0xff]
  %v193 = vld [vmem:[%s11 + $0x10] sm:$0xff]
  %v194 = vld [vmem:[%s11 + $0x18] sm:$0xff]
  %v195 = vpack.c.bf16 %v192, %v191
  %v196 = vpack.c.bf16 %v194, %v193
  %v197 = vld [vmem:[%s12] sm:$0xff]
  %v198 = vld [vmem:[%s12 + $0x8] sm:$0xff]
  %v199 = vld [vmem:[%s12 + $0x10] sm:$0xff]
  %v200 = vld [vmem:[%s12 + $0x18] sm:$0xff]
  %v201 = vpack.c.bf16 %v198, %v197
  %v202 = vpack.c.bf16 %v200, %v199
  %v203 = vld [vmem:[%s14] sm:$0xff]
  %v204 = vld [vmem:[%s14 + $0x8] sm:$0xff]
  %v205 = vld [vmem:[%s14 + $0x10] sm:$0xff]
  %v206 = vld [vmem:[%s14 + $0x18] sm:$0xff]
  %v207 = vpack.c.bf16 %v204, %v203
  %v208 = vpack.c.bf16 %v206, %v205
  %v209 = vld [vmem:[%s16] sm:$0x1]
  %v210 = vld [vmem:[%s13] sm:$0xf]
  %v211 = vld [vmem:[%s15] sm:$0x1]
  %v213 = vlaneseq
  %v214 = vshrl.u32 %v213, 7
  %v215 = vsub.s32 0, %v214
  %v216 = vrot.slane %v211, %v215
  %vm218 = vcmask 31744
  %v220 = vsel %vm218, %v73, 0
  %v223 = vsel %vm218, %v74, 0
  %v226 = vsel %vm218, %v75, 0
  %v229 = vsel %vm218, %v76, 0
  %vm231 = vcmask 1043456
  %v233 = vsel %vm231, %v210, 0
  %235 = vmatprep.subr.mxu0 0.0
  %236 = vmatpush1.msra.mxu0 %v233
  %237 = vmatprep.subr.mxu0 0.0
  %238 = vmatpush1.msra.mxu0 0.0
  %239 = vmatprep.subr.mxu0 0.0
  %240 = vmatpush1.msra.mxu0 0.0
  %241 = vmatprep.subr.mxu0 0.0
  %242 = vmatpush1.msra.mxu0 0.0
  %243 = vmatprep.subr.mxu0 0.0
  %244 = vmatpush1.msra.mxu0 0.0
  %245 = vmatprep.subr.mxu0 0.0
  %246 = vmatpush1.msra.mxu0 0.0
  %247 = vmatprep.subr.mxu0 0.0
  %248 = vmatpush1.msra.mxu0 0.0
  %249 = vmatprep.subr.mxu0 0.0
  %250 = vmatpush1.msra.mxu0 0.0
  %251 = vmatprep.subr.mxu0 0.0
  %252 = vmatpush1.msra.mxu0 0.0
  %253 = vmatprep.subr.mxu0 0.0
  %254 = vmatpush1.msra.mxu0 0.0
  %255 = vmatprep.subr.mxu0 0.0
  %256 = vmatpush1.msra.mxu0 0.0
  %257 = vmatprep.subr.mxu0 0.0
  %258 = vmatpush1.msra.mxu0 0.0
  %259 = vmatprep.subr.mxu0 0.0
  %260 = vmatpush1.msra.mxu0 0.0
  %261 = vmatprep.subr.mxu0 0.0
  %262 = vmatpush1.msra.mxu0 0.0
  %263 = vmatprep.subr.mxu0 0.0
  %264 = vmatpush1.msra.mxu0 0.0
  %265 = vmatprep.subr.mxu0 0.0
  %266 = vmatpush1.msra.mxu0 0.0
  %267 = vmatprep.subr.mxu0 0.0
  %268 = vmatpush1.msra.mxu0 0.0
  %269 = vmatprep.subr.mxu0 0.0
  %270 = vmatpush1.msra.mxu0 0.0
  %271 = vmatprep.subr.mxu0 0.0
  %272 = vmatpush1.msra.mxu0 0.0
  %273 = vmatprep.subr.mxu0 0.0
  %274 = vmatpush1.msra.mxu0 0.0
  %275 = vmatprep.subr.mxu0 0.0
  %276 = vmatpush1.msra.mxu0 0.0
  %277 = vmatprep.subr.mxu0 0.0
  %278 = vmatpush1.msra.mxu0 0.0
  %279 = vmatprep.subr.mxu0 0.0
  %280 = vmatpush1.msra.mxu0 0.0
  %281 = vmatprep.subr.mxu0 0.0
  %282 = vmatpush1.msra.mxu0 0.0
  %283 = vmatprep.subr.mxu0 0.0
  %284 = vmatpush1.msra.mxu0 0.0
  %285 = vmatprep.subr.mxu0 0.0
  %286 = vmatpush1.msra.mxu0 0.0
  %287 = vmatprep.subr.mxu0 0.0
  %288 = vmatpush1.msra.mxu0 0.0
  %289 = vmatprep.subr.mxu0 0.0
  %290 = vmatpush1.msra.mxu0 0.0
  %291 = vmatprep.subr.mxu0 0.0
  %292 = vmatpush1.msra.mxu0 0.0
  %293 = vmatprep.subr.mxu0 0.0
  %294 = vmatpush1.msra.mxu0 0.0
  %295 = vmatprep.subr.mxu0 0.0
  %296 = vmatpush1.msra.mxu0 0.0
  %297 = vmatprep.subr.mxu0 0.0
  %298 = vmatpush1.msra.mxu0 0.0
  %299 = vmatprep.mubr.f32.mxu0 0.0
  %300 = vmatmul.mubr.f32.gmra.mrb[0].mxu0 %v220
  %v301 = vpop.f32.mrb[0].mxu0
  %v302 = vadd.f32 %v216, %v301
  %v303 = vpop.f32.mrb[0].mxu0
  %304 = vmatprep.mubr.f32.mxu0 0.0
  %305 = vmatmul.mubr.f32.gmra.mrb[0].mxu0 %v223
  %v306 = vpop.f32.mrb[0].mxu0
  %v307 = vadd.f32 %v216, %v306
  %v308 = vpop.f32.mrb[0].mxu0
  %309 = vmatprep.mubr.f32.mxu0 0.0
  %310 = vmatmul.mubr.f32.gmra.mrb[0].mxu0 %v226
  %v311 = vpop.f32.mrb[0].mxu0
  %v312 = vadd.f32 %v216, %v311
  %v313 = vpop.f32.mrb[0].mxu0
  %314 = vmatprep.mubr.f32.mxu0 0.0
  %315 = vmatmul.mubr.f32.gmra.mrb[0].mxu0 %v229
  %v316 = vpop.f32.mrb[0].mxu0
  %v317 = vadd.f32 %v216, %v316
  %v318 = vpop.f32.mrb[0].mxu0
  %319 = vdwg.mxu0
  %v320 = vld [vmem:[%s2] sm:$0x1]
  %v322 = vlaneseq
  %v323 = vshrl.u32 %v322, 7
  %v324 = vsub.s32 0, %v323
  %v325 = vrot.slane %v320, %v324
  loop: start=0, step=1, limit=2
  $region86: #{nonlevel_attn_gnn_forward.1} parent=0 // loop_pre_header
    _
  $region87: #{nonlevel_attn_gnn_forward.1} parent=0 // loop_header
    %s328 = sphi 0, %s332
    %p329 = scmp.ge.s32.totalorder %s328, 2
    %v333 = vphi %v325, %v1124
    %v334 = vphi %v325, %v1126
    %v335 = vphi %v325, %v1128
    %v336 = vphi %v325, %v1130
  $region88: #{nonlevel_attn_gnn_forward.1} parent=0 // loop_header_branch
    %331 = sbr.rel (%p329) target = $region92
  $region89: #{nonlevel_attn_gnn_forward.1} parent=0 // loop_body
    %v337 = vpack.c.bf16 %v334, %v333
    %v338 = vpack.c.bf16 %v336, %v335
    %v340 = vlaneseq
    %v341 = vshrl.u32 %v340, 7
    %v342 = vsub.s32 0, %v341
    %v343 = vrot.slane %v190, %v342
    %v346 = vsel %vm129, %v337, 0
    %v349 = vsel %vm129, %v338, 0
    %351 = vmatprep.subr.bf16.mxu0 0
    %352 = vmatpush1.bf16.msra.mxu0 %v188
    %353 = vmatprep.subr.bf16.mxu0 0
    %354 = vmatpush1.bf16.msra.mxu0 %v189
    %355 = vmatprep.subr.bf16.mxu0 0
    %356 = vmatpush1.bf16.msra.mxu0 0
    %357 = vmatprep.subr.bf16.mxu0 0
    %358 = vmatpush1.bf16.msra.mxu0 0
    %359 = vmatprep.subr.bf16.mxu0 0
    %360 = vmatpush1.bf16.msra.mxu0 0
    %361 = vmatprep.subr.bf16.mxu0 0
    %362 = vmatpush1.bf16.msra.mxu0 0
    %363 = vmatprep.subr.bf16.mxu0 0
    %364 = vmatpush1.bf16.msra.mxu0 0
    %365 = vmatprep.subr.bf16.mxu0 0
    %366 = vmatpush1.bf16.msra.mxu0 0
    %367 = vmatprep.subr.bf16.mxu0 0
    %368 = vmatpush1.bf16.msra.mxu0 0
    %369 = vmatprep.subr.bf16.mxu0 0
    %370 = vmatpush1.bf16.msra.mxu0 0
    %371 = vmatprep.subr.bf16.mxu0 0
    %372 = vmatpush1.bf16.msra.mxu0 0
    %373 = vmatprep.subr.bf16.mxu0 0
    %374 = vmatpush1.bf16.msra.mxu0 0
    %375 = vmatprep.subr.bf16.mxu0 0
    %376 = vmatpush1.bf16.msra.mxu0 0
    %377 = vmatprep.subr.bf16.mxu0 0
    %378 = vmatpush1.bf16.msra.mxu0 0
    %379 = vmatprep.subr.bf16.mxu0 0
    %380 = vmatpush1.bf16.msra.mxu0 0
    %381 = vmatprep.subr.bf16.mxu0 0
    %382 = vmatpush1.bf16.msra.mxu0 0
    %383 = vmatprep.mubr.bf16.mxu0 0
    %384 = vmatmul.mubr.bf16.gmra.mrb[0].mxu0 %v346
    %v385 = vpop.f32.mrb[0].mxu0
    %v386 = vadd.f32 %v343, %v385
    %v387 = vpop.f32.mrb[0].mxu0
    %v388 = vpop.f32.mrb[0].mxu0
    %v389 = vadd.f32 %v343, %v388
    %v390 = vpop.f32.mrb[0].mxu0
    %391 = vmatprep.mubr.bf16.mxu0 0
    %392 = vmatmul.mubr.bf16.gmra.mrb[0].mxu0 %v349
    %v393 = vpop.f32.mrb[0].mxu0
    %v394 = vadd.f32 %v343, %v393
    %v395 = vpop.f32.mrb[0].mxu0
    %v396 = vpop.f32.mrb[0].mxu0
    %v397 = vadd.f32 %v343, %v396
    %v398 = vpop.f32.mrb[0].mxu0
    %399 = vdwg.mxu0
    %v400 = vpack.c.bf16 %v389, %v386
    %v401 = vpack.c.bf16 %v397, %v394
    %v403 = vlaneseq
    %v404 = vshrl.u32 %v403, 7
    %v405 = vsub.s32 0, %v404
    %v406 = vrot.slane %v178, %v405
    %v408 = vmul.f32 %v333, %v406
    %v409 = vmul.f32 %v334, %v406
    %v410 = vmul.f32 %v335, %v406
    %v411 = vmul.f32 %v336, %v406
    %v412 = vsel %vm129, %v408, 0.0
    %413 = vadd.xlane.f32.xlu0 %v412
    %v414 = vpop.xlane.xlu0 %413
    %v415 = vsel %vm129, %v409, 0.0
    %416 = vadd.xlane.f32.xlu0 %v415
    %v417 = vpop.xlane.xlu0 %416
    %v418 = vsel %vm129, %v410, 0.0
    %419 = vadd.xlane.f32.xlu0 %v418
    %v420 = vpop.xlane.xlu0 %419
    %v421 = vsel %vm129, %v411, 0.0
    %422 = vadd.xlane.f32.xlu0 %v421
    %v423 = vpop.xlane.xlu0 %422
    %v425 = vlaneseq
    %v426 = vshrl.u32 %v425, 7
    %v427 = vsub.s32 0, %v426
    %v428 = vrot.slane %v179, %v427
    %v430 = vmul.f32 %v386, %v428
    %v431 = vmul.f32 %v389, %v428
    %v432 = vmul.f32 %v394, %v428
    %v433 = vmul.f32 %v397, %v428
    %v434 = vsel %vm129, %v430, 0.0
    %435 = vadd.xlane.f32.xlu0 %v434
    %v436 = vpop.xlane.xlu0 %435
    %v437 = vsel %vm129, %v431, 0.0
    %438 = vadd.xlane.f32.xlu0 %v437
    %v439 = vpop.xlane.xlu0 %438
    %v440 = vsel %vm129, %v432, 0.0
    %441 = vadd.xlane.f32.xlu0 %v440
    %v442 = vpop.xlane.xlu0 %441
    %v443 = vsel %vm129, %v433, 0.0
    %444 = vadd.xlane.f32.xlu0 %v443
    %v445 = vpop.xlane.xlu0 %444
    %446 = vxpose.xlu0.b32.start [1/16] %v436, 128
    %447 = vxpose.xlu0.b32.cont [2/16] %v439, 128
    %448 = vxpose.xlu0.b32.cont [3/16] %v442, 128
    %449 = vxpose.xlu0.b32.cont [4/16] %v445, 128
    %450 = vxpose.xlu0.b32.cont [5/16] 0.0, 128
    %451 = vxpose.xlu0.b32.cont [6/16] 0.0, 128
    %452 = vxpose.xlu0.b32.cont [7/16] 0.0, 128
    %453 = vxpose.xlu0.b32.cont [8/16] 0.0, 128
    %454 = vxpose.xlu0.b32.cont [9/16] 0.0, 128
    %455 = vxpose.xlu0.b32.cont [10/16] 0.0, 128
    %456 = vxpose.xlu0.b32.cont [11/16] 0.0, 128
    %457 = vxpose.xlu0.b32.cont [12/16] 0.0, 128
    %458 = vxpose.xlu0.b32.cont [13/16] 0.0, 128
    %459 = vxpose.xlu0.b32.cont [14/16] 0.0, 128
    %460 = vxpose.xlu0.b32.cont [15/16] 0.0, 128
    %461 = vxpose.xlu0.b32.end [16/16] 0.0, 128
    %v462 = vpop.trf.xlu0
    %v463 = vpop.trf.xlu0
    %v464 = vpop.trf.xlu0
    %v465 = vpop.trf.xlu0
    %v466 = vpop.trf.xlu0
    %v467 = vpop.trf.xlu0
    %v468 = vpop.trf.xlu0
    %v469 = vpop.trf.xlu0
    %v470 = vpop.trf.xlu0
    %v471 = vpop.trf.xlu0
    %v472 = vpop.trf.xlu0
    %v473 = vpop.trf.xlu0
    %v474 = vpop.trf.xlu0
    %v475 = vpop.trf.xlu0
    %v476 = vpop.trf.xlu0
    %v477 = vpop.trf.xlu0
    %v478 = vlaneseq
    %v479 = vshrl.u32 %v478, 7
    %v480 = vsub.s32 0, %v479
    %v481 = vrot.slane %v462, %v480
    %v482 = vadd.f32 %v414, %v481
    %v483 = vadd.f32 %v417, %v481
    %v484 = vadd.f32 %v420, %v481
    %v485 = vadd.f32 %v423, %v481
    %v487 = vlaneseq
    %v488 = vshrl.u32 %v487, 7
    %v489 = vsub.s32 0, %v488
    %v490 = vrot.slane %v180, %v489
    %491 = vset.pattern.permute.xlu0 0
    %492 = vperm.xlu0 %491, %v490
    %v493 = vpop.permute.xlu0 %492
    %v495 = vadd.f32 %v482, %v493
    %v496 = vadd.f32 %v483, %v493
    %v497 = vadd.f32 %v484, %v493
    %v498 = vadd.f32 %v485, %v493
    %v499 = vadd.f32 %v495, %v117
    %v500 = vadd.f32 %v496, %v118
    %v501 = vadd.f32 %v497, %v119
    %v502 = vadd.f32 %v498, %v120
    %v503 = vsel %vm129, %v499, -inf
    %504 = vmax.xlane.f32.xlu0 %v503
    %v505 = vpop.xlane.xlu0 %504
    %v506 = vsel %vm129, %v500, -inf
    %507 = vmax.xlane.f32.xlu0 %v506
    %v508 = vpop.xlane.xlu0 %507
    %v509 = vsel %vm129, %v501, -inf
    %510 = vmax.xlane.f32.xlu0 %v509
    %v511 = vpop.xlane.xlu0 %510
    %v512 = vsel %vm129, %v502, -inf
    %513 = vmax.xlane.f32.xlu0 %v512
    %v514 = vpop.xlane.xlu0 %513
    %v515 = vsub.f32 %v499, %v505
    %v516 = vsub.f32 %v500, %v508
    %v517 = vsub.f32 %v501, %v511
    %v518 = vsub.f32 %v502, %v514
    %v519 = vmul.f32 %v515, 1.442695
    %v520 = vpow.pop %v519
    %v521 = vmul.f32 %v516, 1.442695
    %v522 = vpow.pop %v521
    %v523 = vmul.f32 %v517, 1.442695
    %v524 = vpow.pop %v523
    %v525 = vmul.f32 %v518, 1.442695
    %v526 = vpow.pop %v525
    %v527 = vsel %vm129, %v520, 0.0
    %528 = vadd.xlane.f32.xlu0 %v527
    %v529 = vpop.xlane.xlu0 %528
    %v530 = vsel %vm129, %v522, 0.0
    %531 = vadd.xlane.f32.xlu0 %v530
    %v532 = vpop.xlane.xlu0 %531
    %v533 = vsel %vm129, %v524, 0.0
    %534 = vadd.xlane.f32.xlu0 %v533
    %v535 = vpop.xlane.xlu0 %534
    %v536 = vsel %vm129, %v526, 0.0
    %537 = vadd.xlane.f32.xlu0 %v536
    %v538 = vpop.xlane.xlu0 %537
    %v539 = vmax.f32 %v529, 1e-20
    %v540 = vmax.f32 %v532, 1e-20
    %v541 = vmax.f32 %v535, 1e-20
    %v542 = vmax.f32 %v538, 1e-20
    %v543 = vrcp.pop %v539
    %v544 = vrcp.pop %v540
    %v545 = vrcp.pop %v541
    %v546 = vrcp.pop %v542
    %v547 = vmul.f32 %v520, %v543
    %v548 = vmul.f32 %v522, %v544
    %v549 = vmul.f32 %v524, %v545
    %v550 = vmul.f32 %v526, %v546
    %v551 = vpack.c.bf16 %v548, %v547
    %v552 = vpack.c.bf16 %v550, %v549
    %v554 = vsel %vm129, %v551, 0
    %v557 = vsel %vm129, %v552, 0
    %559 = vmatprep.subr.bf16.mxu0 0
    %560 = vmatpush1.bf16.msra.mxu0 %v400
    %561 = vmatprep.subr.bf16.mxu0 0
    %562 = vmatpush1.bf16.msra.mxu0 %v401
    %563 = vmatprep.subr.bf16.mxu0 0
    %564 = vmatpush1.bf16.msra.mxu0 0
    %565 = vmatprep.subr.bf16.mxu0 0
    %566 = vmatpush1.bf16.msra.mxu0 0
    %567 = vmatprep.subr.bf16.mxu0 0
    %568 = vmatpush1.bf16.msra.mxu0 0
    %569 = vmatprep.subr.bf16.mxu0 0
    %570 = vmatpush1.bf16.msra.mxu0 0
    %571 = vmatprep.subr.bf16.mxu0 0
    %572 = vmatpush1.bf16.msra.mxu0 0
    %573 = vmatprep.subr.bf16.mxu0 0
    %574 = vmatpush1.bf16.msra.mxu0 0
    %575 = vmatprep.subr.bf16.mxu0 0
    %576 = vmatpush1.bf16.msra.mxu0 0
    %577 = vmatprep.subr.bf16.mxu0 0
    %578 = vmatpush1.bf16.msra.mxu0 0
    %579 = vmatprep.subr.bf16.mxu0 0
    %580 = vmatpush1.bf16.msra.mxu0 0
    %581 = vmatprep.subr.bf16.mxu0 0
    %582 = vmatpush1.bf16.msra.mxu0 0
    %583 = vmatprep.subr.bf16.mxu0 0
    %584 = vmatpush1.bf16.msra.mxu0 0
    %585 = vmatprep.subr.bf16.mxu0 0
    %586 = vmatpush1.bf16.msra.mxu0 0
    %587 = vmatprep.subr.bf16.mxu0 0
    %588 = vmatpush1.bf16.msra.mxu0 0
    %589 = vmatprep.subr.bf16.mxu0 0
    %590 = vmatpush1.bf16.msra.mxu0 0
    %591 = vmatprep.mubr.bf16.mxu0 0
    %592 = vmatmul.mubr.bf16.gmra.mrb[0].mxu0 %v554
    %v593 = vpop.f32.mrb[0].mxu0
    %v594 = vadd.f32 0.0, %v593
    %v595 = vpop.f32.mrb[0].mxu0
    %v596 = vpop.f32.mrb[0].mxu0
    %v597 = vadd.f32 0.0, %v596
    %v598 = vpop.f32.mrb[0].mxu0
    %599 = vmatprep.mubr.bf16.mxu0 0
    %600 = vmatmul.mubr.bf16.gmra.mrb[0].mxu0 %v557
    %v601 = vpop.f32.mrb[0].mxu0
    %v602 = vadd.f32 0.0, %v601
    %v603 = vpop.f32.mrb[0].mxu0
    %v604 = vpop.f32.mrb[0].mxu0
    %v605 = vadd.f32 0.0, %v604
    %v606 = vpop.f32.mrb[0].mxu0
    %607 = vdwg.mxu0
    %v608 = vmul.f32 %v594, %v150
    %v609 = vmul.f32 %v597, %v151
    %v610 = vmul.f32 %v602, %v152
    %v611 = vmul.f32 %v605, %v153
    %v613 = vlaneseq
    %v614 = vshrl.u32 %v613, 7
    %v615 = vsub.s32 0, %v614
    %v616 = vrot.slane %v181, %v615
    %v618 = vmul.f32 %v333, %v616
    %v619 = vmul.f32 %v334, %v616
    %v620 = vmul.f32 %v335, %v616
    %v621 = vmul.f32 %v336, %v616
    %v622 = vsel %vm129, %v618, 0.0
    %623 = vadd.xlane.f32.xlu0 %v622
    %v624 = vpop.xlane.xlu0 %623
    %v625 = vsel %vm129, %v619, 0.0
    %626 = vadd.xlane.f32.xlu0 %v625
    %v627 = vpop.xlane.xlu0 %626
    %v628 = vsel %vm129, %v620, 0.0
    %629 = vadd.xlane.f32.xlu0 %v628
    %v630 = vpop.xlane.xlu0 %629
    %v631 = vsel %vm129, %v621, 0.0
    %632 = vadd.xlane.f32.xlu0 %v631
    %v633 = vpop.xlane.xlu0 %632
    %v635 = vlaneseq
    %v636 = vshrl.u32 %v635, 7
    %v637 = vsub.s32 0, %v636
    %v638 = vrot.slane %v182, %v637
    %v640 = vmul.f32 %v386, %v638
    %v641 = vmul.f32 %v389, %v638
    %v642 = vmul.f32 %v394, %v638
    %v643 = vmul.f32 %v397, %v638
    %v644 = vsel %vm129, %v640, 0.0
    %645 = vadd.xlane.f32.xlu0 %v644
    %v646 = vpop.xlane.xlu0 %645
    %v647 = vsel %vm129, %v641, 0.0
    %648 = vadd.xlane.f32.xlu0 %v647
    %v649 = vpop.xlane.xlu0 %648
    %v650 = vsel %vm129, %v642, 0.0
    %651 = vadd.xlane.f32.xlu0 %v650
    %v652 = vpop.xlane.xlu0 %651
    %v653 = vsel %vm129, %v643, 0.0
    %654 = vadd.xlane.f32.xlu0 %v653
    %v655 = vpop.xlane.xlu0 %654
    %656 = vxpose.xlu0.b32.start [1/16] %v646, 128
    %657 = vxpose.xlu0.b32.cont [2/16] %v649, 128
    %658 = vxpose.xlu0.b32.cont [3/16] %v652, 128
    %659 = vxpose.xlu0.b32.cont [4/16] %v655, 128
    %660 = vxpose.xlu0.b32.cont [5/16] 0.0, 128
    %661 = vxpose.xlu0.b32.cont [6/16] 0.0, 128
    %662 = vxpose.xlu0.b32.cont [7/16] 0.0, 128
    %663 = vxpose.xlu0.b32.cont [8/16] 0.0, 128
    %664 = vxpose.xlu0.b32.cont [9/16] 0.0, 128
    %665 = vxpose.xlu0.b32.cont [10/16] 0.0, 128
    %666 = vxpose.xlu0.b32.cont [11/16] 0.0, 128
    %667 = vxpose.xlu0.b32.cont [12/16] 0.0, 128
    %668 = vxpose.xlu0.b32.cont [13/16] 0.0, 128
    %669 = vxpose.xlu0.b32.cont [14/16] 0.0, 128
    %670 = vxpose.xlu0.b32.cont [15/16] 0.0, 128
    %671 = vxpose.xlu0.b32.end [16/16] 0.0, 128
    %v672 = vpop.trf.xlu0
    %v673 = vpop.trf.xlu0
    %v674 = vpop.trf.xlu0
    %v675 = vpop.trf.xlu0
    %v676 = vpop.trf.xlu0
    %v677 = vpop.trf.xlu0
    %v678 = vpop.trf.xlu0
    %v679 = vpop.trf.xlu0
    %v680 = vpop.trf.xlu0
    %v681 = vpop.trf.xlu0
    %v682 = vpop.trf.xlu0
    %v683 = vpop.trf.xlu0
    %v684 = vpop.trf.xlu0
    %v685 = vpop.trf.xlu0
    %v686 = vpop.trf.xlu0
    %v687 = vpop.trf.xlu0
    %v688 = vlaneseq
    %v689 = vshrl.u32 %v688, 7
    %v690 = vsub.s32 0, %v689
    %v691 = vrot.slane %v672, %v690
    %v692 = vadd.f32 %v624, %v691
    %v693 = vadd.f32 %v627, %v691
    %v694 = vadd.f32 %v630, %v691
    %v695 = vadd.f32 %v633, %v691
    %v697 = vlaneseq
    %v698 = vshrl.u32 %v697, 7
    %v699 = vsub.s32 0, %v698
    %v700 = vrot.slane %v183, %v699
    %701 = vset.pattern.permute.xlu0 0
    %702 = vperm.xlu0 %701, %v700
    %v703 = vpop.permute.xlu0 %702
    %v705 = vadd.f32 %v692, %v703
    %v706 = vadd.f32 %v693, %v703
    %v707 = vadd.f32 %v694, %v703
    %v708 = vadd.f32 %v695, %v703
    %v709 = vadd.f32 %v705, %v125
    %v710 = vadd.f32 %v706, %v126
    %v711 = vadd.f32 %v707, %v127
    %v712 = vadd.f32 %v708, %v128
    %v713 = vsel %vm129, %v709, -inf
    %714 = vmax.xlane.f32.xlu0 %v713
    %v715 = vpop.xlane.xlu0 %714
    %v716 = vsel %vm129, %v710, -inf
    %717 = vmax.xlane.f32.xlu0 %v716
    %v718 = vpop.xlane.xlu0 %717
    %v719 = vsel %vm129, %v711, -inf
    %720 = vmax.xlane.f32.xlu0 %v719
    %v721 = vpop.xlane.xlu0 %720
    %v722 = vsel %vm129, %v712, -inf
    %723 = vmax.xlane.f32.xlu0 %v722
    %v724 = vpop.xlane.xlu0 %723
    %v725 = vsub.f32 %v709, %v715
    %v726 = vsub.f32 %v710, %v718
    %v727 = vsub.f32 %v711, %v721
    %v728 = vsub.f32 %v712, %v724
    %v729 = vmul.f32 %v725, 1.442695
    %v730 = vpow.pop %v729
    %v731 = vmul.f32 %v726, 1.442695
    %v732 = vpow.pop %v731
    %v733 = vmul.f32 %v727, 1.442695
    %v734 = vpow.pop %v733
    %v735 = vmul.f32 %v728, 1.442695
    %v736 = vpow.pop %v735
    %v737 = vsel %vm129, %v730, 0.0
    %738 = vadd.xlane.f32.xlu0 %v737
    %v739 = vpop.xlane.xlu0 %738
    %v740 = vsel %vm129, %v732, 0.0
    %741 = vadd.xlane.f32.xlu0 %v740
    %v742 = vpop.xlane.xlu0 %741
    %v743 = vsel %vm129, %v734, 0.0
    %744 = vadd.xlane.f32.xlu0 %v743
    %v745 = vpop.xlane.xlu0 %744
    %v746 = vsel %vm129, %v736, 0.0
    %747 = vadd.xlane.f32.xlu0 %v746
    %v748 = vpop.xlane.xlu0 %747
    %v749 = vmax.f32 %v739, 1e-20
    %v750 = vmax.f32 %v742, 1e-20
    %v751 = vmax.f32 %v745, 1e-20
    %v752 = vmax.f32 %v748, 1e-20
    %v753 = vrcp.pop %v749
    %v754 = vrcp.pop %v750
    %v755 = vrcp.pop %v751
    %v756 = vrcp.pop %v752
    %v757 = vmul.f32 %v730, %v753
    %v758 = vmul.f32 %v732, %v754
    %v759 = vmul.f32 %v734, %v755
    %v760 = vmul.f32 %v736, %v756
    %v761 = vpack.c.bf16 %v758, %v757
    %v762 = vpack.c.bf16 %v760, %v759
    %v764 = vsel %vm129, %v761, 0
    %v767 = vsel %vm129, %v762, 0
    %769 = vmatprep.subr.bf16.mxu0 0
    %770 = vmatpush1.bf16.msra.mxu0 %v400
    %771 = vmatprep.subr.bf16.mxu0 0
    %772 = vmatpush1.bf16.msra.mxu0 %v401
    %773 = vmatprep.subr.bf16.mxu0 0
    %774 = vmatpush1.bf16.msra.mxu0 0
    %775 = vmatprep.subr.bf16.mxu0 0
    %776 = vmatpush1.bf16.msra.mxu0 0
    %777 = vmatprep.subr.bf16.mxu0 0
    %778 = vmatpush1.bf16.msra.mxu0 0
    %779 = vmatprep.subr.bf16.mxu0 0
    %780 = vmatpush1.bf16.msra.mxu0 0
    %781 = vmatprep.subr.bf16.mxu0 0
    %782 = vmatpush1.bf16.msra.mxu0 0
    %783 = vmatprep.subr.bf16.mxu0 0
    %784 = vmatpush1.bf16.msra.mxu0 0
    %785 = vmatprep.subr.bf16.mxu0 0
    %786 = vmatpush1.bf16.msra.mxu0 0
    %787 = vmatprep.subr.bf16.mxu0 0
    %788 = vmatpush1.bf16.msra.mxu0 0
    %789 = vmatprep.subr.bf16.mxu0 0
    %790 = vmatpush1.bf16.msra.mxu0 0
    %791 = vmatprep.subr.bf16.mxu0 0
    %792 = vmatpush1.bf16.msra.mxu0 0
    %793 = vmatprep.subr.bf16.mxu0 0
    %794 = vmatpush1.bf16.msra.mxu0 0
    %795 = vmatprep.subr.bf16.mxu0 0
    %796 = vmatpush1.bf16.msra.mxu0 0
    %797 = vmatprep.subr.bf16.mxu0 0
    %798 = vmatpush1.bf16.msra.mxu0 0
    %799 = vmatprep.subr.bf16.mxu0 0
    %800 = vmatpush1.bf16.msra.mxu0 0
    %801 = vmatprep.mubr.bf16.mxu0 0
    %802 = vmatmul.mubr.bf16.gmra.mrb[0].mxu0 %v764
    %v803 = vpop.f32.mrb[0].mxu0
    %v804 = vadd.f32 0.0, %v803
    %v805 = vpop.f32.mrb[0].mxu0
    %v806 = vpop.f32.mrb[0].mxu0
    %v807 = vadd.f32 0.0, %v806
    %v808 = vpop.f32.mrb[0].mxu0
    %809 = vmatprep.mubr.bf16.mxu0 0
    %810 = vmatmul.mubr.bf16.gmra.mrb[0].mxu0 %v767
    %v811 = vpop.f32.mrb[0].mxu0
    %v812 = vadd.f32 0.0, %v811
    %v813 = vpop.f32.mrb[0].mxu0
    %v814 = vpop.f32.mrb[0].mxu0
    %v815 = vadd.f32 0.0, %v814
    %v816 = vpop.f32.mrb[0].mxu0
    %817 = vdwg.mxu0
    %v818 = vmul.f32 %v804, %v174
    %v819 = vmul.f32 %v807, %v175
    %v820 = vmul.f32 %v812, %v176
    %v821 = vmul.f32 %v815, %v177
    %v822 = vpack.c.bf16 %v609, %v608
    %v823 = vpack.c.bf16 %v611, %v610
    %v825 = vsel %vm129, %v822, 0
    %v828 = vsel %vm129, %v823, 0
    %830 = vmatprep.subr.bf16.mxu0 0
    %831 = vmatpush1.bf16.msra.mxu0 %v195
    %832 = vmatprep.subr.bf16.mxu0 0
    %833 = vmatpush1.bf16.msra.mxu0 %v196
    %834 = vmatprep.subr.bf16.mxu0 0
    %835 = vmatpush1.bf16.msra.mxu0 0
    %836 = vmatprep.subr.bf16.mxu0 0
    %837 = vmatpush1.bf16.msra.mxu0 0
    %838 = vmatprep.subr.bf16.mxu0 0
    %839 = vmatpush1.bf16.msra.mxu0 0
    %840 = vmatprep.subr.bf16.mxu0 0
    %841 = vmatpush1.bf16.msra.mxu0 0
    %842 = vmatprep.subr.bf16.mxu0 0
    %843 = vmatpush1.bf16.msra.mxu0 0
    %844 = vmatprep.subr.bf16.mxu0 0
    %845 = vmatpush1.bf16.msra.mxu0 0
    %846 = vmatprep.subr.bf16.mxu0 0
    %847 = vmatpush1.bf16.msra.mxu0 0
    %848 = vmatprep.subr.bf16.mxu0 0
    %849 = vmatpush1.bf16.msra.mxu0 0
    %850 = vmatprep.subr.bf16.mxu0 0
    %851 = vmatpush1.bf16.msra.mxu0 0
    %852 = vmatprep.subr.bf16.mxu0 0
    %853 = vmatpush1.bf16.msra.mxu0 0
    %854 = vmatprep.subr.bf16.mxu0 0
    %855 = vmatpush1.bf16.msra.mxu0 0
    %856 = vmatprep.subr.bf16.mxu0 0
    %857 = vmatpush1.bf16.msra.mxu0 0
    %858 = vmatprep.subr.bf16.mxu0 0
    %859 = vmatpush1.bf16.msra.mxu0 0
    %860 = vmatprep.subr.bf16.mxu0 0
    %861 = vmatpush1.bf16.msra.mxu0 0
    %862 = vmatprep.mubr.bf16.mxu0 0
    %863 = vmatmul.mubr.bf16.gmra.mrb[0].mxu0 %v825
    %v864 = vpop.f32.mrb[0].mxu0
    %v865 = vadd.f32 0.0, %v864
    %v866 = vpop.f32.mrb[0].mxu0
    %v867 = vpop.f32.mrb[0].mxu0
    %v868 = vadd.f32 0.0, %v867
    %v869 = vpop.f32.mrb[0].mxu0
    %870 = vmatprep.mubr.bf16.mxu0 0
    %871 = vmatmul.mubr.bf16.gmra.mrb[0].mxu0 %v828
    %v872 = vpop.f32.mrb[0].mxu0
    %v873 = vadd.f32 0.0, %v872
    %v874 = vpop.f32.mrb[0].mxu0
    %v875 = vpop.f32.mrb[0].mxu0
    %v876 = vadd.f32 0.0, %v875
    %v877 = vpop.f32.mrb[0].mxu0
    %878 = vdwg.mxu0
    %v879 = vadd.f32 %v302, %v865
    %v880 = vadd.f32 %v307, %v868
    %v881 = vadd.f32 %v312, %v873
    %v882 = vadd.f32 %v317, %v876
    %v883 = vpack.c.bf16 %v819, %v818
    %v884 = vpack.c.bf16 %v821, %v820
    %v886 = vsel %vm129, %v883, 0
    %v889 = vsel %vm129, %v884, 0
    %891 = vmatprep.subr.bf16.mxu0 0
    %892 = vmatpush1.bf16.msra.mxu0 %v201
    %893 = vmatprep.subr.bf16.mxu0 0
    %894 = vmatpush1.bf16.msra.mxu0 %v202
    %895 = vmatprep.subr.bf16.mxu0 0
    %896 = vmatpush1.bf16.msra.mxu0 0
    %897 = vmatprep.subr.bf16.mxu0 0
    %898 = vmatpush1.bf16.msra.mxu0 0
    %899 = vmatprep.subr.bf16.mxu0 0
    %900 = vmatpush1.bf16.msra.mxu0 0
    %901 = vmatprep.subr.bf16.mxu0 0
    %902 = vmatpush1.bf16.msra.mxu0 0
    %903 = vmatprep.subr.bf16.mxu0 0
    %904 = vmatpush1.bf16.msra.mxu0 0
    %905 = vmatprep.subr.bf16.mxu0 0
    %906 = vmatpush1.bf16.msra.mxu0 0
    %907 = vmatprep.subr.bf16.mxu0 0
    %908 = vmatpush1.bf16.msra.mxu0 0
    %909 = vmatprep.subr.bf16.mxu0 0
    %910 = vmatpush1.bf16.msra.mxu0 0
    %911 = vmatprep.subr.bf16.mxu0 0
    %912 = vmatpush1.bf16.msra.mxu0 0
    %913 = vmatprep.subr.bf16.mxu0 0
    %914 = vmatpush1.bf16.msra.mxu0 0
    %915 = vmatprep.subr.bf16.mxu0 0
    %916 = vmatpush1.bf16.msra.mxu0 0
    %917 = vmatprep.subr.bf16.mxu0 0
    %918 = vmatpush1.bf16.msra.mxu0 0
    %919 = vmatprep.subr.bf16.mxu0 0
    %920 = vmatpush1.bf16.msra.mxu0 0
    %921 = vmatprep.subr.bf16.mxu0 0
    %922 = vmatpush1.bf16.msra.mxu0 0
    %923 = vmatprep.mubr.bf16.mxu0 0
    %924 = vmatmul.mubr.bf16.gmra.mrb[0].mxu0 %v886
    %v925 = vpop.f32.mrb[0].mxu0
    %v926 = vadd.f32 0.0, %v925
    %v927 = vpop.f32.mrb[0].mxu0
    %v928 = vpop.f32.mrb[0].mxu0
    %v929 = vadd.f32 0.0, %v928
    %v930 = vpop.f32.mrb[0].mxu0
    %931 = vmatprep.mubr.bf16.mxu0 0
    %932 = vmatmul.mubr.bf16.gmra.mrb[0].mxu0 %v889
    %v933 = vpop.f32.mrb[0].mxu0
    %v934 = vadd.f32 0.0, %v933
    %v935 = vpop.f32.mrb[0].mxu0
    %v936 = vpop.f32.mrb[0].mxu0
    %v937 = vadd.f32 0.0, %v936
    %v938 = vpop.f32.mrb[0].mxu0
    %939 = vdwg.mxu0
    %v940 = vadd.f32 %v879, %v926
    %v941 = vadd.f32 %v880, %v929
    %v942 = vadd.f32 %v881, %v934
    %v943 = vadd.f32 %v882, %v937
    %v945 = vlaneseq
    %v946 = vshrl.u32 %v945, 7
    %v947 = vsub.s32 0, %v946
    %v948 = vrot.slane %v209, %v947
    %950 = vmatprep.subr.bf16.mxu0 0
    %951 = vmatpush1.bf16.msra.mxu0 %v207
    %952 = vmatprep.subr.bf16.mxu0 0
    %953 = vmatpush1.bf16.msra.mxu0 %v208
    %954 = vmatprep.subr.bf16.mxu0 0
    %955 = vmatpush1.bf16.msra.mxu0 0
    %956 = vmatprep.subr.bf16.mxu0 0
    %957 = vmatpush1.bf16.msra.mxu0 0
    %958 = vmatprep.subr.bf16.mxu0 0
    %959 = vmatpush1.bf16.msra.mxu0 0
    %960 = vmatprep.subr.bf16.mxu0 0
    %961 = vmatpush1.bf16.msra.mxu0 0
    %962 = vmatprep.subr.bf16.mxu0 0
    %963 = vmatpush1.bf16.msra.mxu0 0
    %964 = vmatprep.subr.bf16.mxu0 0
    %965 = vmatpush1.bf16.msra.mxu0 0
    %966 = vmatprep.subr.bf16.mxu0 0
    %967 = vmatpush1.bf16.msra.mxu0 0
    %968 = vmatprep.subr.bf16.mxu0 0
    %969 = vmatpush1.bf16.msra.mxu0 0
    %970 = vmatprep.subr.bf16.mxu0 0
    %971 = vmatpush1.bf16.msra.mxu0 0
    %972 = vmatprep.subr.bf16.mxu0 0
    %973 = vmatpush1.bf16.msra.mxu0 0
    %974 = vmatprep.subr.bf16.mxu0 0
    %975 = vmatpush1.bf16.msra.mxu0 0
    %976 = vmatprep.subr.bf16.mxu0 0
    %977 = vmatpush1.bf16.msra.mxu0 0
    %978 = vmatprep.subr.bf16.mxu0 0
    %979 = vmatpush1.bf16.msra.mxu0 0
    %980 = vmatprep.subr.bf16.mxu0 0
    %981 = vmatpush1.bf16.msra.mxu0 0
    %982 = vmatprep.mubr.bf16.mxu0 0
    %983 = vmatmul.mubr.bf16.gmra.mrb[0].mxu0 %v346
    %v984 = vpop.f32.mrb[0].mxu0
    %v985 = vadd.f32 %v948, %v984
    %v986 = vpop.f32.mrb[0].mxu0
    %v987 = vpop.f32.mrb[0].mxu0
    %v988 = vadd.f32 %v948, %v987
    %v989 = vpop.f32.mrb[0].mxu0
    %990 = vmatprep.mubr.bf16.mxu0 0
    %991 = vmatmul.mubr.bf16.gmra.mrb[0].mxu0 %v349
    %v992 = vpop.f32.mrb[0].mxu0
    %v993 = vadd.f32 %v948, %v992
    %v994 = vpop.f32.mrb[0].mxu0
    %v995 = vpop.f32.mrb[0].mxu0
    %v996 = vadd.f32 %v948, %v995
    %v997 = vpop.f32.mrb[0].mxu0
    %998 = vdwg.mxu0
    %v999 = vadd.f32 %v940, %v985
    %v1000 = vadd.f32 %v941, %v988
    %v1001 = vadd.f32 %v942, %v993
    %v1002 = vadd.f32 %v943, %v996
    %v1003 = vxor.u32 %v999, 2147483648
    %v1004 = vxor.u32 %v1000, 2147483648
    %v1005 = vxor.u32 %v1001, 2147483648
    %v1006 = vxor.u32 %v1002, 2147483648
    %v1007 = vmul.f32 %v1003, 1.442695
    %v1008 = vpow.pop %v1007
    %v1009 = vmul.f32 %v1004, 1.442695
    %v1010 = vpow.pop %v1009
    %v1011 = vmul.f32 %v1005, 1.442695
    %v1012 = vpow.pop %v1011
    %v1013 = vmul.f32 %v1006, 1.442695
    %v1014 = vpow.pop %v1013
    %v1015 = vadd.f32 %v1008, 1.0
    %v1016 = vadd.f32 %v1010, 1.0
    %v1017 = vadd.f32 %v1012, 1.0
    %v1018 = vadd.f32 %v1014, 1.0
    %v1019 = vrcp.pop %v1015
    %v1020 = vmul.f32 1.0, %v1019
    %v1021 = vrcp.pop %v1016
    %v1022 = vmul.f32 1.0, %v1021
    %v1023 = vrcp.pop %v1017
    %v1024 = vmul.f32 1.0, %v1023
    %v1025 = vrcp.pop %v1018
    %v1026 = vmul.f32 1.0, %v1025
    %1031 = vrot.lane.b32.xlu0 %v985, 64
    %v1032 = vpop.permute.xlu0 %1031
    %1033 = vrot.lane.b32.xlu0 %v988, 64
    %v1034 = vpop.permute.xlu0 %1033
    %1035 = vrot.lane.b32.xlu0 %v993, 64
    %v1036 = vpop.permute.xlu0 %1035
    %1037 = vrot.lane.b32.xlu0 %v996, 64
    %v1038 = vpop.permute.xlu0 %1037
    %v1043 = vmul.f32 %v1020, %v1032
    %v1044 = vmul.f32 %v1022, %v1034
    %v1045 = vmul.f32 %v1024, %v1036
    %v1046 = vmul.f32 %v1026, %v1038
    %1051 = vrot.lane.b32.xlu0 %v1043, 64
    %v1052 = vpop.permute.xlu0 %1051
    %1053 = vrot.lane.b32.xlu0 %v1044, 64
    %v1054 = vpop.permute.xlu0 %1053
    %1055 = vrot.lane.b32.xlu0 %v1045, 64
    %v1056 = vpop.permute.xlu0 %1055
    %1057 = vrot.lane.b32.xlu0 %v1046, 64
    %v1058 = vpop.permute.xlu0 %1057
    %v1063 = vadd.f32 %v940, %v1052
    %v1064 = vadd.f32 %v941, %v1054
    %v1065 = vadd.f32 %v942, %v1056
    %v1066 = vadd.f32 %v943, %v1058
    %v1067 = vtanh.pop %v1063
    %v1068 = vtanh.pop %v1064
    %v1069 = vtanh.pop %v1065
    %v1070 = vtanh.pop %v1066
    %v1071 = vsub.f32 1.0, %v1020
    %v1072 = vsub.f32 1.0, %v1022
    %v1073 = vsub.f32 1.0, %v1024
    %v1074 = vsub.f32 1.0, %v1026
    %1079 = vrot.lane.b32.xlu0 %v1067, 96
    %v1080 = vpop.permute.xlu0 %1079
    %1081 = vrot.lane.b32.xlu0 %v1068, 96
    %v1082 = vpop.permute.xlu0 %1081
    %1083 = vrot.lane.b32.xlu0 %v1069, 96
    %v1084 = vpop.permute.xlu0 %1083
    %1085 = vrot.lane.b32.xlu0 %v1070, 96
    %v1086 = vpop.permute.xlu0 %1085
    %v1091 = vmul.f32 %v1071, %v1080
    %v1092 = vmul.f32 %v1072, %v1082
    %v1093 = vmul.f32 %v1073, %v1084
    %v1094 = vmul.f32 %v1074, %v1086
    %1099 = vrot.lane.b32.xlu0 %v333, 32
    %v1100 = vpop.permute.xlu0 %1099
    %1101 = vrot.lane.b32.xlu0 %v334, 32
    %v1102 = vpop.permute.xlu0 %1101
    %1103 = vrot.lane.b32.xlu0 %v335, 32
    %v1104 = vpop.permute.xlu0 %1103
    %1105 = vrot.lane.b32.xlu0 %v336, 32
    %v1106 = vpop.permute.xlu0 %1105
    %v1111 = vmul.f32 %v1020, %v1100
    %v1112 = vmul.f32 %v1022, %v1102
    %v1113 = vmul.f32 %v1024, %v1104
    %v1114 = vmul.f32 %v1026, %v1106
    %v1115 = vadd.f32 %v1091, %v1111
    %v1116 = vadd.f32 %v1092, %v1112
    %v1117 = vadd.f32 %v1093, %v1113
    %v1118 = vadd.f32 %v1094, %v1114
    %1123 = vrot.lane.b32.xlu0 %v1115, 96
    %v1124 = vpop.permute.xlu0 %1123
    %1125 = vrot.lane.b32.xlu0 %v1116, 96
    %v1126 = vpop.permute.xlu0 %1125
    %1127 = vrot.lane.b32.xlu0 %v1117, 96
    %v1128 = vpop.permute.xlu0 %1127
    %1129 = vrot.lane.b32.xlu0 %v1118, 96
    %v1130 = vpop.permute.xlu0 %1129
  $region90: #{nonlevel_attn_gnn_forward.1} parent=0 // loop_footer
    %s332 = sadd.s32 1, %s328
  $region91: #{nonlevel_attn_gnn_forward.1} parent=0 // loop_footer_branch
    %327 = sbr.rel target = $region87
  $region92: #{nonlevel_attn_gnn_forward.1} parent=0 // loop_exit
    _
  %v1135 = vld [vmem:[%s17] sm:$0xff]
  %v1136 = vld [vmem:[%s17 + $0x8] sm:$0xff]
  %v1137 = vld [vmem:[%s17 + $0x10] sm:$0xff]
  %v1138 = vld [vmem:[%s17 + $0x18] sm:$0xff]
  %v1139 = vld [vmem:[%s18] sm:$0x1]
  %v1141 = vlaneseq
  %v1142 = vshrl.u32 %v1141, 7
  %v1143 = vsub.s32 0, %v1142
  %v1144 = vrot.slane %v1139, %v1143
  %v1147 = vsel %vm129, %v333, 0
  %v1150 = vsel %vm129, %v334, 0
  %v1153 = vsel %vm129, %v335, 0
  %v1156 = vsel %vm129, %v336, 0
  %1158 = vmatprep.subr.mxu0 0.0
  %1159 = vmatpush1.msra.mxu0 %v1135
  %1160 = vmatprep.subr.mxu0 0.0
  %1161 = vmatpush1.msra.mxu0 %v1136
  %1162 = vmatprep.subr.mxu0 0.0
  %1163 = vmatpush1.msra.mxu0 %v1137
  %1164 = vmatprep.subr.mxu0 0.0
  %1165 = vmatpush1.msra.mxu0 %v1138
  %1166 = vmatprep.subr.mxu0 0.0
  %1167 = vmatpush1.msra.mxu0 0.0
  %1168 = vmatprep.subr.mxu0 0.0
  %1169 = vmatpush1.msra.mxu0 0.0
  %1170 = vmatprep.subr.mxu0 0.0
  %1171 = vmatpush1.msra.mxu0 0.0
  %1172 = vmatprep.subr.mxu0 0.0
  %1173 = vmatpush1.msra.mxu0 0.0
  %1174 = vmatprep.subr.mxu0 0.0
  %1175 = vmatpush1.msra.mxu0 0.0
  %1176 = vmatprep.subr.mxu0 0.0
  %1177 = vmatpush1.msra.mxu0 0.0
  %1178 = vmatprep.subr.mxu0 0.0
  %1179 = vmatpush1.msra.mxu0 0.0
  %1180 = vmatprep.subr.mxu0 0.0
  %1181 = vmatpush1.msra.mxu0 0.0
  %1182 = vmatprep.subr.mxu0 0.0
  %1183 = vmatpush1.msra.mxu0 0.0
  %1184 = vmatprep.subr.mxu0 0.0
  %1185 = vmatpush1.msra.mxu0 0.0
  %1186 = vmatprep.subr.mxu0 0.0
  %1187 = vmatpush1.msra.mxu0 0.0
  %1188 = vmatprep.subr.mxu0 0.0
  %1189 = vmatpush1.msra.mxu0 0.0
  %1190 = vmatprep.subr.mxu0 0.0
  %1191 = vmatpush1.msra.mxu0 0.0
  %1192 = vmatprep.subr.mxu0 0.0
  %1193 = vmatpush1.msra.mxu0 0.0
  %1194 = vmatprep.subr.mxu0 0.0
  %1195 = vmatpush1.msra.mxu0 0.0
  %1196 = vmatprep.subr.mxu0 0.0
  %1197 = vmatpush1.msra.mxu0 0.0
  %1198 = vmatprep.subr.mxu0 0.0
  %1199 = vmatpush1.msra.mxu0 0.0
  %1200 = vmatprep.subr.mxu0 0.0
  %1201 = vmatpush1.msra.mxu0 0.0
  %1202 = vmatprep.subr.mxu0 0.0
  %1203 = vmatpush1.msra.mxu0 0.0
  %1204 = vmatprep.subr.mxu0 0.0
  %1205 = vmatpush1.msra.mxu0 0.0
  %1206 = vmatprep.subr.mxu0 0.0
  %1207 = vmatpush1.msra.mxu0 0.0
  %1208 = vmatprep.subr.mxu0 0.0
  %1209 = vmatpush1.msra.mxu0 0.0
  %1210 = vmatprep.subr.mxu0 0.0
  %1211 = vmatpush1.msra.mxu0 0.0
  %1212 = vmatprep.subr.mxu0 0.0
  %1213 = vmatpush1.msra.mxu0 0.0
  %1214 = vmatprep.subr.mxu0 0.0
  %1215 = vmatpush1.msra.mxu0 0.0
  %1216 = vmatprep.subr.mxu0 0.0
  %1217 = vmatpush1.msra.mxu0 0.0
  %1218 = vmatprep.subr.mxu0 0.0
  %1219 = vmatpush1.msra.mxu0 0.0
  %1220 = vmatprep.subr.mxu0 0.0
  %1221 = vmatpush1.msra.mxu0 0.0
  %1222 = vmatprep.mubr.f32.mxu0 0.0
  %1223 = vmatmul.mubr.f32.gmra.mrb[0].mxu0 %v1147
  %v1224 = vpop.f32.mrb[0].mxu0
  %v1225 = vadd.f32 %v1144, %v1224
  %v1226 = vpop.f32.mrb[0].mxu0
  %1227 = vmatprep.mubr.f32.mxu0 0.0
  %1228 = vmatmul.mubr.f32.gmra.mrb[0].mxu0 %v1150
  %v1229 = vpop.f32.mrb[0].mxu0
  %v1230 = vadd.f32 %v1144, %v1229
  %v1231 = vpop.f32.mrb[0].mxu0
  %1232 = vmatprep.mubr.f32.mxu0 0.0
  %1233 = vmatmul.mubr.f32.gmra.mrb[0].mxu0 %v1153
  %v1234 = vpop.f32.mrb[0].mxu0
  %v1235 = vadd.f32 %v1144, %v1234
  %v1236 = vpop.f32.mrb[0].mxu0
  %1237 = vmatprep.mubr.f32.mxu0 0.0
  %1238 = vmatmul.mubr.f32.gmra.mrb[0].mxu0 %v1156
  %v1239 = vpop.f32.mrb[0].mxu0
  %v1240 = vadd.f32 %v1144, %v1239
  %v1241 = vpop.f32.mrb[0].mxu0
  %1242 = vdwg.mxu0
  %v1243 = vmax.f32 %v1225, 0.0
  %v1244 = vmax.f32 %v1230, 0.0
  %v1245 = vmax.f32 %v1235, 0.0
  %v1246 = vmax.f32 %v1240, 0.0
  %v1247 = vld [vmem:[%s19] sm:$0xff]
  %v1248 = vld [vmem:[%s19 + $0x8] sm:$0xff]
  %v1249 = vld [vmem:[%s19 + $0x10] sm:$0xff]
  %v1250 = vld [vmem:[%s19 + $0x18] sm:$0xff]
  %v1251 = vld [vmem:[%s19 + $0x20] sm:$0xff]
  %v1252 = vld [vmem:[%s19 + $0x28] sm:$0xff]
  %v1253 = vld [vmem:[%s19 + $0x30] sm:$0xff]
  %v1254 = vld [vmem:[%s19 + $0x38] sm:$0xff]
  %v1255 = vld [vmem:[%s19 + $0x40] sm:$0xff]
  %v1256 = vld [vmem:[%s19 + $0x48] sm:$0xff]
  %v1257 = vld [vmem:[%s19 + $0x50] sm:$0xff]
  %v1258 = vld [vmem:[%s19 + $0x58] sm:$0xff]
  %v1259 = vld [vmem:[%s19 + $0x60] sm:$0xff]
  %v1260 = vld [vmem:[%s19 + $0x68] sm:$0xff]
  %v1261 = vld [vmem:[%s19 + $0x70] sm:$0xff]
  %v1262 = vld [vmem:[%s19 + $0x78] sm:$0xff]
  %v1263 = vld [vmem:[%s20] sm:$0x1]
  %v1265 = vlaneseq
  %v1266 = vshrl.u32 %v1265, 7
  %v1267 = vsub.s32 0, %v1266
  %v1268 = vrot.slane %v1263, %v1267
  %1270 = vmatprep.subr.mxu0 0.0
  %1271 = vmatpush1.msra.mxu0 %v1247
  %1272 = vmatprep.subr.mxu0 0.0
  %1273 = vmatpush1.msra.mxu0 %v1248
  %1274 = vmatprep.subr.mxu0 0.0
  %1275 = vmatpush1.msra.mxu0 %v1249
  %1276 = vmatprep.subr.mxu0 0.0
  %1277 = vmatpush1.msra.mxu0 %v1250
  %1278 = vmatprep.subr.mxu0 0.0
  %1279 = vmatpush1.msra.mxu0 %v1251
  %1280 = vmatprep.subr.mxu0 0.0
  %1281 = vmatpush1.msra.mxu0 %v1252
  %1282 = vmatprep.subr.mxu0 0.0
  %1283 = vmatpush1.msra.mxu0 %v1253
  %1284 = vmatprep.subr.mxu0 0.0
  %1285 = vmatpush1.msra.mxu0 %v1254
  %1286 = vmatprep.subr.mxu0 0.0
  %1287 = vmatpush1.msra.mxu0 %v1255
  %1288 = vmatprep.subr.mxu0 0.0
  %1289 = vmatpush1.msra.mxu0 %v1256
  %1290 = vmatprep.subr.mxu0 0.0
  %1291 = vmatpush1.msra.mxu0 %v1257
  %1292 = vmatprep.subr.mxu0 0.0
  %1293 = vmatpush1.msra.mxu0 %v1258
  %1294 = vmatprep.subr.mxu0 0.0
  %1295 = vmatpush1.msra.mxu0 %v1259
  %1296 = vmatprep.subr.mxu0 0.0
  %1297 = vmatpush1.msra.mxu0 %v1260
  %1298 = vmatprep.subr.mxu0 0.0
  %1299 = vmatpush1.msra.mxu0 %v1261
  %1300 = vmatprep.subr.mxu0 0.0
  %1301 = vmatpush1.msra.mxu0 %v1262
  %1302 = vmatprep.subr.mxu0 0.0
  %1303 = vmatpush1.msra.mxu0 0.0
  %1304 = vmatprep.subr.mxu0 0.0
  %1305 = vmatpush1.msra.mxu0 0.0
  %1306 = vmatprep.subr.mxu0 0.0
  %1307 = vmatpush1.msra.mxu0 0.0
  %1308 = vmatprep.subr.mxu0 0.0
  %1309 = vmatpush1.msra.mxu0 0.0
  %1310 = vmatprep.subr.mxu0 0.0
  %1311 = vmatpush1.msra.mxu0 0.0
  %1312 = vmatprep.subr.mxu0 0.0
  %1313 = vmatpush1.msra.mxu0 0.0
  %1314 = vmatprep.subr.mxu0 0.0
  %1315 = vmatpush1.msra.mxu0 0.0
  %1316 = vmatprep.subr.mxu0 0.0
  %1317 = vmatpush1.msra.mxu0 0.0
  %1318 = vmatprep.subr.mxu0 0.0
  %1319 = vmatpush1.msra.mxu0 0.0
  %1320 = vmatprep.subr.mxu0 0.0
  %1321 = vmatpush1.msra.mxu0 0.0
  %1322 = vmatprep.subr.mxu0 0.0
  %1323 = vmatpush1.msra.mxu0 0.0
  %1324 = vmatprep.subr.mxu0 0.0
  %1325 = vmatpush1.msra.mxu0 0.0
  %1326 = vmatprep.subr.mxu0 0.0
  %1327 = vmatpush1.msra.mxu0 0.0
  %1328 = vmatprep.subr.mxu0 0.0
  %1329 = vmatpush1.msra.mxu0 0.0
  %1330 = vmatprep.subr.mxu0 0.0
  %1331 = vmatpush1.msra.mxu0 0.0
  %1332 = vmatprep.subr.mxu0 0.0
  %1333 = vmatpush1.msra.mxu0 0.0
  %1334 = vmatprep.mubr.f32.mxu0 0.0
  %1335 = vmatmul.mubr.f32.gmra.mrb[0].mxu0 %v1243
  %v1336 = vpop.f32.mrb[0].mxu0
  %v1337 = vadd.f32 %v1268, %v1336
  %v1338 = vpop.f32.mrb[0].mxu0
  %1339 = vmatprep.mubr.f32.mxu0 0.0
  %1340 = vmatmul.mubr.f32.gmra.mrb[0].mxu0 %v1244
  %v1341 = vpop.f32.mrb[0].mxu0
  %v1342 = vadd.f32 %v1268, %v1341
  %v1343 = vpop.f32.mrb[0].mxu0
  %1344 = vmatprep.mubr.f32.mxu0 0.0
  %1345 = vmatmul.mubr.f32.gmra.mrb[0].mxu0 %v1245
  %v1346 = vpop.f32.mrb[0].mxu0
  %v1347 = vadd.f32 %v1268, %v1346
  %v1348 = vpop.f32.mrb[0].mxu0
  %1349 = vmatprep.mubr.f32.mxu0 0.0
  %1350 = vmatmul.mubr.f32.gmra.mrb[0].mxu0 %v1246
  %v1351 = vpop.f32.mrb[0].mxu0
  %v1352 = vadd.f32 %v1268, %v1351
  %v1353 = vpop.f32.mrb[0].mxu0
  %1354 = vdwg.mxu0
  %vm1355 = vcmask 15360
  %1356 = vst.msk [vmem:[%s21] sm:$0xff] %vm1355, %v1337
  %1357 = vst.msk [vmem:[%s21 + $0x8] sm:$0xff] %vm1355, %v1342
  %1358 = vst.msk [vmem:[%s21 + $0x10] sm:$0xff] %vm1355, %v1347
  %1359 = vst.msk [vmem:[%s21 + $0x18] sm:$0xff] %vm1355, %v1352
  // Predicated region
  $region93: #{nonlevel_attn_gnn_forward.1} parent=0 // pred_check
    _
  $region94: #{nonlevel_attn_gnn_forward.1} parent=0 // pred_check_branch
    %1361 = sbr.rel (0) target = $region96
  $region95: #{nonlevel_attn_gnn_forward.1} parent=0 // pred_region
    _
  $region96: #{nonlevel_attn_gnn_forward.1} parent=0 // pred_fallthru
    _
  // Predicated region
  $region97: #{nonlevel_attn_gnn_forward.1} parent=0 // pred_check
    _
  $region98: #{nonlevel_attn_gnn_forward.1} parent=0 // pred_check_branch
    %1363 = sbr.rel (0) target = $region100
  $region99: #{nonlevel_attn_gnn_forward.1} parent=0 // pred_region
    _
  $region100: #{nonlevel_attn_gnn_forward.1} parent=0 // pred_fallthru
    _

</llo_original>
